<compile_context>
chip_gen: v7x
topology: tpu7x:2x2x1
jax: 0.10.0
libtpu: 0.0.40
codegen_flags: <defaults>
</compile_context>

<pallas_src>
import math
from functools import partial

import numpy as np
import jax
import jax.numpy as jnp
from jax.experimental import pallas as pl
from jax.experimental.pallas import tpu as pltpu

# ---- config consistent with DetBEVDecoder(bev_shape=(8,8), dim=32, num_queries=16, num_heads=4) ----
BS = 2
DIM = 32              # bev feature channels ("dim")
H = W = 8             # bev_shape
S = H * W             # kv sequence length (flattened bev)
NQ = 16               # num_queries
NH = 4                # num_heads (DIM % NH == 0)
HD = DIM // NH        # head dim
NCLS = 10             # num_classes -> logits have NCLS + 1 channels
NBOX = 9              # bbox channels
HID = 128             # ConvMLP hidden width (fixed at 128 in the module)
PEC = 6               # positional-encoding channels
K = 9 * (DIM + PEC)   # full im2col patch length (342) -- reference path only
KX = 9 * DIM          # feature-only im2col patch length (288) -- kernel path
KPAD = 384            # KX padded to a multiple of 128 for aligned MXU feed
OUT_W = 128           # lane-dense output width: [classes(11) | bboxes(9) | zeros]

# ---- bf16 weight-pack rows (lane width 128) ----
R_QK = 0                      # (NH*NQ, DIM)  pre-scaled block-diag queries folded with Wk_h^T
R_MASK = R_QK + NH * NQ       # (NH*NQ, DIM)  per-head output-selection mask (0/1)
R_WV = R_MASK + NH * NQ       # (DIM, DIM)    v half of kv projection (feature rows)
R_W1 = R_WV + DIM             # (DIM, 128)    bbox hidden layer
R_WC = R_W1 + DIM             # (DIM, 128)    class head, columns at output lanes 0..10
R_W2 = R_WC + DIM             # (HID, 128)    bbox output layer, columns at output lanes 11..19
WB_R = R_W2 + HID             # 352 rows

# ---- f32 bias-pack rows (lane width 128) ----
R_CONVB = 0                   # (S, DIM)      conv bias + folded PE-conv contribution
R_SPE = R_CONVB + S           # (NH*NQ, S)    q_bd @ (PE part of k)^T
R_VPE = R_SPE + NH * NQ       # (S, DIM)      PE part of v projection + bias
R_B1 = R_VPE + S              # row: b1 (128 lanes)
R_BC = R_B1 + 8               # row: bc at lanes 0..10
R_B2 = R_BC + 8               # row: b2 at lanes 11..19
FP_R = R_B2 + 8               # 216 rows


def positional_encoding(h, w):
    """6-channel positional encoding (sin/cos + linear ramps), shape (1, 6, h, w)."""
    ys = jnp.linspace(-1.0, 1.0, h)
    xs = jnp.linspace(-1.0, 1.0, w)
    gy, gx = jnp.meshgrid(ys, xs, indexing="ij")
    pe = jnp.stack(
        [jnp.sin(gy * jnp.pi), jnp.cos(gy * jnp.pi),
         jnp.sin(gx * jnp.pi), jnp.cos(gx * jnp.pi), gy, gx], axis=0)
    return pe[None].astype(jnp.float32)


def im2col_3x3(x):
    """(BS, H, W, C) -> (BS, H*W, 9*C); patch order (ky, kx, c), pad=1."""
    bs, h, w, c = x.shape
    xp = jnp.pad(x, ((0, 0), (1, 1), (1, 1), (0, 0)))
    cols = [xp[:, ky:ky + h, kx:kx + w, :] for ky in range(3) for kx in range(3)]
    return jnp.concatenate(cols, axis=-1).reshape(bs, h * w, 9 * c)


# ----------------------------------------------------------------------------
# Pallas kernel: one grid step handles `bb` batch elements (bb static).
# ----------------------------------------------------------------------------
def det_bev_kernel(patches_ref, wconv_ref, wb_ref, fp_ref, out_ref, *, bb):
    # --- ConvPEBlock 3x3 conv for ALL bb batch elements in one bf16 matmul (f32 accum) ---
    hc = jnp.dot(patches_ref[...], wconv_ref[...],
                 preferred_element_type=jnp.float32)                       # (bb*S, DIM)

    # --- batch-invariant params: loaded once, outside the unrolled batch loop ---
    conv_b = fp_ref[R_CONVB:R_CONVB + S, :DIM]                             # (S, DIM)
    spe = fp_ref[R_SPE:R_SPE + NH * NQ, :S]                                # (NH*NQ, S)
    vpe = fp_ref[R_VPE:R_VPE + S, :DIM]                                    # (S, DIM)
    b1 = fp_ref[R_B1:R_B1 + 1, :]                                          # (1, 128)
    bc = fp_ref[R_BC:R_BC + 1, :]                                          # (1, 128)
    b2 = fp_ref[R_B2:R_B2 + 1, :]                                          # (1, 128)

    qk = wb_ref[R_QK:R_QK + NH * NQ, :DIM]                                 # (NH*NQ, DIM) bf16
    hmsk = wb_ref[R_MASK:R_MASK + NH * NQ, :DIM].astype(jnp.float32)       # (NH*NQ, DIM)
    wv = wb_ref[R_WV:R_WV + DIM, :DIM]                                     # (DIM, DIM)  bf16
    w1 = wb_ref[R_W1:R_W1 + DIM, :]                                        # (DIM, 128)  bf16
    wc = wb_ref[R_WC:R_WC + DIM, :]                                        # (DIM, 128)  bf16
    w2 = wb_ref[R_W2:R_W2 + HID, :]                                        # (HID, 128)  bf16

    # output-lane mask: lanes 11..19 hold bboxes, lanes 0..10 hold class logits
    lane = jax.lax.broadcasted_iota(jnp.int32, (NQ, OUT_W), 1)
    box_lane = (lane >= NCLS + 1) & (lane < NCLS + 1 + NBOX)

    for b in range(bb):                                                    # static unroll
        h = jnp.maximum(hc[b * S:(b + 1) * S, :] + conv_b, 0.0)            # (S, DIM) f32
        hb = h.astype(jnp.bfloat16)

        # v projection only (k projection folded into qk / spe offline)
        v = jnp.dot(hb, wv, preferred_element_type=jnp.float32) + vpe      # (S, DIM)

        # all heads at once: s = Qk @ h^T + Spe (block-diag pre-scaled queries)
        s = jax.lax.dot_general(qk, hb, (((1,), (1,)), ((), ())),
                                preferred_element_type=jnp.float32) + spe  # (NH*NQ, S)
        s = s - jnp.max(s, axis=-1, keepdims=True)
        p = jnp.exp(s)
        p = p * pl.reciprocal(jnp.sum(p, axis=-1, keepdims=True), approx=True)

        full = jnp.dot(p.astype(jnp.bfloat16), v.astype(jnp.bfloat16),
                       preferred_element_type=jnp.float32)                 # (NH*NQ, DIM)
        # head reassembly: keep only head-h's value columns of row block h, sum the blocks
        masked = full * hmsk
        bev = masked[0:NQ]
        for hh in range(1, NH):
            bev = bev + masked[hh * NQ:(hh + 1) * NQ]                      # (NQ, DIM)
        bevb = bev.astype(jnp.bfloat16)

        # bbox MLP hidden + class logits (both weights lane-padded, output-lane-aligned)
        hid = jnp.maximum(jnp.dot(bevb, w1, preferred_element_type=jnp.float32) + b1, 0.0)
        cls = jnp.dot(bevb, wc, preferred_element_type=jnp.float32) + bc   # (NQ, 128)
        box = jax.nn.sigmoid(jnp.dot(hid.astype(jnp.bfloat16), w2,
                                     preferred_element_type=jnp.float32) + b2)  # (NQ, 128)

        # single unmasked lane-dense store: [classes | bboxes | zeros]
        out_ref[b * NQ:(b + 1) * NQ, :] = jnp.where(box_lane, box, cls)


# ----------------------------------------------------------------------------
# Host-side glue
# ----------------------------------------------------------------------------
def _prepare_patches(x_nchw):
    """NCHW -> bf16 -> NHWC -> feature-only im2col -> pad to KPAD -> (BS*S, KPAD)."""
    bs = x_nchw.shape[0]
    x = jnp.transpose(x_nchw.astype(jnp.bfloat16), (0, 2, 3, 1))           # (BS, H, W, DIM)
    patches = im2col_3x3(x)                                                # (BS, S, KX)
    patches = jnp.pad(patches, ((0, 0), (0, 0), (0, KPAD - KX)))           # (BS, S, KPAD)
    return patches.reshape(bs * S, KPAD)


def pack_params(p):
    """Fold / pad / pack all batch-invariant parameters into 3 kernel inputs."""
    scale = 1.0 / math.sqrt(HD)

    # split kv projection into k / v halves and PE / feature rows
    wk_h, wv_h = p["wkv_h"][:, :DIM], p["wkv_h"][:, DIM:]
    wk_pe, wv_pe = p["wkv_pe"][:, :DIM], p["wkv_pe"][:, DIM:]
    bk, bv = p["bkv"][0, :DIM], p["bkv"][0, DIM:]

    # block-diagonal, pre-scaled query matrix and head-selection mask (rows head-major)
    q = p["query"] * scale
    qbd = jnp.zeros((NH * NQ, DIM), jnp.float32)
    mask = jnp.zeros((NH * NQ, DIM), jnp.float32)
    for hh in range(NH):
        sl = slice(hh * HD, (hh + 1) * HD)
        qbd = qbd.at[hh * NQ:(hh + 1) * NQ, sl].set(q[:, sl])
        mask = mask.at[hh * NQ:(hh + 1) * NQ, sl].set(1.0)

    pe_hwc = jnp.transpose(p["pe"][0], (1, 2, 0))                          # (H, W, 6)
    pe_flat = pe_hwc.reshape(S, PEC)

    # k projection folded into the query side: s = Qk @ h^T + Spe
    qk = qbd @ wk_h.T                                                      # (NH*NQ, DIM)
    spe = qbd @ (pe_flat @ wk_pe + bk).T                                   # (NH*NQ, S)
    vpe = pe_flat @ wv_pe + bv                                             # (S, DIM)

    # PE channels of the 3x3 conv folded into an additive (S, DIM) bias
    w3 = p["wconv"].reshape(9, DIM + PEC, DIM)                             # (patch, cin, cout)
    wconv_pe = w3[:, :PEC, :].reshape(9 * PEC, DIM)                        # (54, DIM)
    wconv_x = w3[:, PEC:, :].reshape(KX, DIM)                              # (288, DIM)
    pe_patches = im2col_3x3(pe_hwc[None])[0]                               # (S, 54)
    conv_b = pe_patches @ wconv_pe + p["bconv"]                            # (S, DIM)

    # conv weight: feature rows only, zero-padded to KPAD, bf16
    wconv_pack = (jnp.zeros((KPAD, DIM), jnp.float32).at[:KX].set(wconv_x)
                  .astype(jnp.bfloat16))

    # lane-padded head weights / biases, pre-placed at output lanes
    wc_pad = jnp.zeros((DIM, OUT_W), jnp.float32).at[:, :NCLS + 1].set(p["wc"])
    w2_pad = jnp.zeros((HID, OUT_W), jnp.float32).at[:, NCLS + 1:NCLS + 1 + NBOX].set(p["w2"])
    bc_row = jnp.zeros((OUT_W,), jnp.float32).at[:NCLS + 1].set(p["bc"][0])
    b2_row = jnp.zeros((OUT_W,), jnp.float32).at[NCLS + 1:NCLS + 1 + NBOX].set(p["b2"][0])

    wb = jnp.zeros((WB_R, OUT_W), jnp.float32)
    wb = wb.at[R_QK:R_QK + NH * NQ, :DIM].set(qk)
    wb = wb.at[R_MASK:R_MASK + NH * NQ, :DIM].set(mask)
    wb = wb.at[R_WV:R_WV + DIM, :DIM].set(wv_h)
    wb = wb.at[R_W1:R_W1 + DIM, :].set(p["w1"])
    wb = wb.at[R_WC:R_WC + DIM, :].set(wc_pad)
    wb = wb.at[R_W2:R_W2 + HID, :].set(w2_pad)
    wb = wb.astype(jnp.bfloat16)

    fp = jnp.zeros((FP_R, OUT_W), jnp.float32)
    fp = fp.at[R_CONVB:R_CONVB + S, :DIM].set(conv_b)
    fp = fp.at[R_SPE:R_SPE + NH * NQ, :S].set(spe)
    fp = fp.at[R_VPE:R_VPE + S, :DIM].set(vpe)
    fp = fp.at[R_B1, :].set(p["b1"][0])
    fp = fp.at[R_BC, :].set(bc_row)
    fp = fp.at[R_B2, :].set(b2_row)
    return wconv_pack, wb, fp


def _dual_tensorcore():
    """True on chips exposing 2 TensorCores per device (v7x / v5p / v4 megacore)."""
    try:
        kind = jax.devices()[0].device_kind.lower()
    except Exception:
        return False
    return any(tag in kind for tag in ("v7", "v5p", "v4"))


@partial(jax.jit, static_argnames=("bb",))
def _det_bev_call(x_nchw, wconv_pack, wb, fp, *, bb):
    bs = x_nchw.shape[0]
    nb = bs // bb
    patches = _prepare_patches(x_nchw)                                     # (bs*S, KPAD) bf16

    out = pl.pallas_call(
        partial(det_bev_kernel, bb=bb),
        grid=(nb,),
        in_specs=[
            pl.BlockSpec((bb * S, KPAD), lambda i: (i, 0)),    # per-step batch-block of patches
            pl.BlockSpec((KPAD, DIM), lambda i: (0, 0)),       # conv weight (bf16, constant)
            pl.BlockSpec((WB_R, OUT_W), lambda i: (0, 0)),     # bf16 weight pack (constant)
            pl.BlockSpec((FP_R, OUT_W), lambda i: (0, 0)),     # f32 bias pack (constant)
        ],
        out_specs=pl.BlockSpec((bb * NQ, OUT_W), lambda i: (i, 0)),
        out_shape=jax.ShapeDtypeStruct((bs * NQ, OUT_W), jnp.float32),
        compiler_params=pltpu.CompilerParams(dimension_semantics=("parallel",)),
    )(patches, wconv_pack, wb, fp)

    out = out.reshape(bs, NQ, OUT_W)
    return out[:, :, :NCLS + 1], out[:, :, NCLS + 1:NCLS + 1 + NBOX]


def det_bev_decoder(x_nchw, params):
    """Pallas implementation. x_nchw: (BS, dim, H, W) -> (classes, bboxes)."""
    bs = x_nchw.shape[0]
    # v5e/v6e (1 TC): fold the whole batch into one grid step (no per-step overhead,
    # full MXU row fill). v7x/v5p/v4 (2 TCs): one batch element per grid step per core.
    bb = 1 if (_dual_tensorcore() and bs > 1) else bs
    return _det_bev_call(x_nchw, params["wconv_pack"], params["wb_pack"],
                         params["fp_pack"], bb=bb)


# ----------------------------------------------------------------------------
# Plain-JAX reference (original, un-fused formulation) for validation
# ----------------------------------------------------------------------------
def det_bev_decoder_ref(x_nchw, params):
    bs = x_nchw.shape[0]
    pe_hwc = jnp.transpose(params["pe"][0], (1, 2, 0))
    x_nhwc = jnp.transpose(x_nchw, (0, 2, 3, 1))
    feat = jnp.concatenate(
        [jnp.broadcast_to(pe_hwc[None], (bs, H, W, PEC)), x_nhwc], axis=-1)
    patches = im2col_3x3(feat)                                             # (BS, S, K) f32
    pe_flat = pe_hwc.reshape(S, PEC)

    cls_list, box_list = [], []
    scale = 1.0 / math.sqrt(HD)
    for b in range(bs):
        h = jnp.maximum(patches[b] @ params["wconv"] + params["bconv"], 0.0)
        kv = pe_flat @ params["wkv_pe"] + h @ params["wkv_h"] + params["bkv"]
        k, v = kv[:, :DIM], kv[:, DIM:]
        heads = []
        for hh in range(NH):
            lo = hh * HD
            qh = params["query"][:, lo:lo + HD]
            kh = k[:, lo:lo + HD]
            vh = v[:, lo:lo + HD]
            s = (qh @ kh.T) * scale
            s = s - jnp.max(s, axis=-1, keepdims=True)
            p = jnp.exp(s)
            p = p / jnp.sum(p, axis=-1, keepdims=True)
            heads.append(p @ vh)
        bev = jnp.concatenate(heads, axis=-1)
        hid = jnp.maximum(bev @ params["w1"] + params["b1"], 0.0)
        box_list.append(jax.nn.sigmoid(hid @ params["w2"] + params["b2"]))
        cls_list.append(bev @ params["wc"] + params["bc"])
    return jnp.stack(cls_list, 0), jnp.stack(box_list, 0)


def init_params(key):
    ks = jax.random.split(key, 14)

    def dense(k, shape, fan_in):
        return (jax.random.normal(k, shape, jnp.float32) / math.sqrt(fan_in)).astype(jnp.float32)

    # ConvPEBlock conv: torch Conv2d weight (out=DIM, in=DIM+6, 3, 3) -> im2col layout (K, DIM)
    wconv4d = dense(ks[0], (DIM, DIM + PEC, 3, 3), (DIM + PEC) * 9)
    wconv = jnp.transpose(wconv4d, (2, 3, 1, 0)).reshape(K, DIM)
    bconv = dense(ks[1], (1, DIM), (DIM + PEC) * 9)

    # nn.Embedding(num_queries, dim): default N(0, 1)
    query = jax.random.normal(ks[2], (NQ, DIM), jnp.float32)

    # kv_encoder: Conv1d(dim+6, 2*dim, 1) as matmul (dim+6, 2*dim); split PE / feature rows
    wkv = dense(ks[3], (DIM + PEC, 2 * DIM), DIM + PEC)
    wkv_pe, wkv_h = wkv[:PEC], wkv[PEC:]
    bkv = dense(ks[4], (1, 2 * DIM), DIM + PEC)

    # bbox_decoder: ConvMLP(dim, 128, 9)
    w1 = dense(ks[5], (DIM, HID), DIM)
    b1 = dense(ks[6], (1, HID), DIM)
    w2 = dense(ks[7], (HID, NBOX), HID)
    b2 = dense(ks[8], (1, NBOX), HID)

    # class_decoder: Conv1d(dim, num_classes + 1, 1)
    wc = dense(ks[9], (DIM, NCLS + 1), DIM)
    bc = dense(ks[10], (1, NCLS + 1), DIM)

    params = {
        "pe": positional_encoding(H, W),
        "wconv": wconv, "bconv": bconv, "query": query,
        "wkv_pe": wkv_pe, "wkv_h": wkv_h, "bkv": bkv,
        "w1": w1, "b1": b1, "w2": w2, "b2": b2,
        "wc": wc, "bc": bc,
    }
    wconv_pack, wb, fp = pack_params(params)
    params["wconv_pack"] = wconv_pack
    params["wb_pack"] = wb
    params["fp_pack"] = fp
    return params


if __name__ == "__main__":
    key = jax.random.PRNGKey(0)
    pkey, xkey = jax.random.split(key)
    params = init_params(pkey)

    # PyTorch-style NCHW input: (BS, dim, x, y)
    x = jax.random.normal(xkey, (BS, DIM, H, W), jnp.float32)

    classes, bboxes = jax.block_until_ready(det_bev_decoder(x, params))

    assert classes.shape == (BS, NQ, NCLS + 1)
    assert bboxes.shape == (BS, NQ, NBOX)

    ref_c, ref_b = det_bev_decoder_ref(x, params)
    np.testing.assert_allclose(np.asarray(classes), np.asarray(ref_c), rtol=5e-2, atol=5e-2)
    np.testing.assert_allclose(np.asarray(bboxes), np.asarray(ref_b), rtol=5e-2, atol=5e-2)

    print("KERNEL_OK")
</pallas_src>

<mosaic_0001>
module attributes {stable_mosaic.version = 11 : i64} {
  func.func @det_bev_kernel(%arg0: i32, %arg1: memref<128x384xbf16, #tpu.memory_space<vmem>>, %arg2: memref<384x32xbf16, #tpu.memory_space<vmem>>, %arg3: memref<352x128xbf16, #tpu.memory_space<vmem>>, %arg4: memref<216x128xf32, #tpu.memory_space<vmem>>, %arg5: memref<32x128xf32, #tpu.memory_space<vmem>>) attributes {dimension_semantics = [#tpu.dimension_semantics<parallel>], iteration_bounds = array<i64: 1>, scalar_prefetch = 0 : i64, scratch_operands = 0 : i64, tpu.core_type = #tpu.core_type<tc>, window_params = [{transform_indices = @transform_0, window_bounds = array<i64: 128, 384>}, {pipeline_mode = #tpu.pipeline_mode<synchronous>, transform_indices = @transform_1, window_bounds = array<i64: 384, 32>}, {pipeline_mode = #tpu.pipeline_mode<synchronous>, transform_indices = @transform_2, window_bounds = array<i64: 352, 128>}, {pipeline_mode = #tpu.pipeline_mode<synchronous>, transform_indices = @transform_3, window_bounds = array<i64: 216, 128>}, {transform_indices = @transform_4, window_bounds = array<i64: 32, 128>}]} {
    %c0 = arith.constant 0 : index
    %c0_0 = arith.constant 0 : index
    %0 = vector.load %arg1[%c0, %c0_0] : memref<128x384xbf16, #tpu.memory_space<vmem>>, vector<128x384xbf16>
    %c0_1 = arith.constant 0 : index
    %c0_2 = arith.constant 0 : index
    %1 = vector.load %arg2[%c0_1, %c0_2] : memref<384x32xbf16, #tpu.memory_space<vmem>>, vector<384x32xbf16>
    %cst = arith.constant dense<0.000000e+00> : vector<128x32xf32>
    %2 = tpu.matmul %0, %1, %cst {dimension_numbers = #tpu.dot_dimension_numbers<[1], [0], [0], [1], [0, 0, 1, 1], [], []>} : vector<128x384xbf16>, vector<384x32xbf16>, vector<128x32xf32> -> vector<128x32xf32>
    %c0_3 = arith.constant 0 : index
    %c0_4 = arith.constant 0 : index
    %3 = vector.load %arg4[%c0_3, %c0_4] : memref<216x128xf32, #tpu.memory_space<vmem>>, vector<64x32xf32>
    %c64 = arith.constant 64 : index
    %c0_5 = arith.constant 0 : index
    %4 = vector.load %arg4[%c64, %c0_5] : memref<216x128xf32, #tpu.memory_space<vmem>>, vector<64x64xf32>
    %c128 = arith.constant 128 : index
    %c0_6 = arith.constant 0 : index
    %5 = vector.load %arg4[%c128, %c0_6] : memref<216x128xf32, #tpu.memory_space<vmem>>, vector<64x32xf32>
    %c192 = arith.constant 192 : index
    %c0_7 = arith.constant 0 : index
    %6 = vector.load %arg4[%c192, %c0_7] : memref<216x128xf32, #tpu.memory_space<vmem>>, vector<1x128xf32>
    %c200 = arith.constant 200 : index
    %c0_8 = arith.constant 0 : index
    %7 = vector.load %arg4[%c200, %c0_8] : memref<216x128xf32, #tpu.memory_space<vmem>>, vector<1x128xf32>
    %c208 = arith.constant 208 : index
    %c0_9 = arith.constant 0 : index
    %8 = vector.load %arg4[%c208, %c0_9] : memref<216x128xf32, #tpu.memory_space<vmem>>, vector<1x128xf32>
    %c0_10 = arith.constant 0 : index
    %c0_11 = arith.constant 0 : index
    %9 = vector.load %arg3[%c0_10, %c0_11] : memref<352x128xbf16, #tpu.memory_space<vmem>>, vector<64x32xbf16>
    %c64_12 = arith.constant 64 : index
    %c0_13 = arith.constant 0 : index
    %10 = vector.load %arg3[%c64_12, %c0_13] : memref<352x128xbf16, #tpu.memory_space<vmem>>, vector<64x32xbf16>
    %11 = arith.extf %10 : vector<64x32xbf16> to vector<64x32xf32>
    %c128_14 = arith.constant 128 : index
    %c0_15 = arith.constant 0 : index
    %12 = vector.load %arg3[%c128_14, %c0_15] : memref<352x128xbf16, #tpu.memory_space<vmem>>, vector<32x32xbf16>
    %c160 = arith.constant 160 : index
    %c0_16 = arith.constant 0 : index
    %13 = vector.load %arg3[%c160, %c0_16] : memref<352x128xbf16, #tpu.memory_space<vmem>>, vector<32x128xbf16>
    %c192_17 = arith.constant 192 : index
    %c0_18 = arith.constant 0 : index
    %14 = vector.load %arg3[%c192_17, %c0_18] : memref<352x128xbf16, #tpu.memory_space<vmem>>, vector<32x128xbf16>
    %c224 = arith.constant 224 : index
    %c0_19 = arith.constant 0 : index
    %15 = vector.load %arg3[%c224, %c0_19] : memref<352x128xbf16, #tpu.memory_space<vmem>>, vector<128x128xbf16>
    %16 = tpu.iota {dimensions = array<i32: 1>} : vector<16x128xi32>
    %c11_i32 = arith.constant 11 : i32
    %17 = vector.broadcast %c11_i32 : i32 to vector<16x128xi32>
    %18 = arith.cmpi sge, %16, %17 : vector<16x128xi32>
    %c20_i32 = arith.constant 20 : i32
    %19 = vector.broadcast %c20_i32 : i32 to vector<16x128xi32>
    %20 = arith.cmpi slt, %16, %19 : vector<16x128xi32>
    %21 = arith.andi %18, %20 : vector<16x128xi1>
    %22 = vector.extract_strided_slice %2 {offsets = [0, 0], sizes = [64, 32], strides = [1, 1]} : vector<128x32xf32> to vector<64x32xf32>
    %23 = arith.addf %22, %3 : vector<64x32xf32>
    %cst_20 = arith.constant 0.000000e+00 : f32
    %24 = vector.broadcast %cst_20 : f32 to vector<64x32xf32>
    %25 = arith.maximumf %23, %24 : vector<64x32xf32>
    %26 = arith.truncf %25 : vector<64x32xf32> to vector<64x32xbf16>
    %cst_21 = arith.constant dense<0.000000e+00> : vector<64x32xf32>
    %27 = tpu.matmul %26, %12, %cst_21 {dimension_numbers = #tpu.dot_dimension_numbers<[1], [0], [0], [1], [0, 0, 1, 1], [], []>} : vector<64x32xbf16>, vector<32x32xbf16>, vector<64x32xf32> -> vector<64x32xf32>
    %28 = arith.addf %27, %5 : vector<64x32xf32>
    %cst_22 = arith.constant dense<0.000000e+00> : vector<64x64xf32>
    %29 = tpu.matmul %9, %26, %cst_22 {dimension_numbers = #tpu.dot_dimension_numbers<[1], [1], [0], [0], [0, 0, 1, 0], [], []>} : vector<64x32xbf16>, vector<64x32xbf16>, vector<64x64xf32> -> vector<64x64xf32>
    %30 = arith.addf %29, %4 : vector<64x64xf32>
    %cst_23 = arith.constant dense<0xFF800000> : vector<64xf32>
    %31 = vector.multi_reduction <maximumf>, %30, %cst_23 [1] : vector<64x64xf32> to vector<64xf32>
    %32 = vector.shape_cast %31 : vector<64xf32> to vector<64x1xf32>
    %33 = vector.broadcast %32 : vector<64x1xf32> to vector<64x64xf32>
    %34 = arith.subf %30, %33 : vector<64x64xf32>
    %35 = math.exp %34 : vector<64x64xf32>
    %cst_24 = arith.constant dense<0.000000e+00> : vector<64xf32>
    %36 = vector.multi_reduction <add>, %35, %cst_24 [1] : vector<64x64xf32> to vector<64xf32>
    %37 = vector.shape_cast %36 : vector<64xf32> to vector<64x1xf32>
    %38 = tpu.reciprocal %37 {approx = true} : vector<64x1xf32> -> vector<64x1xf32>
    %39 = vector.broadcast %38 : vector<64x1xf32> to vector<64x64xf32>
    %40 = arith.mulf %35, %39 : vector<64x64xf32>
    %41 = arith.truncf %40 : vector<64x64xf32> to vector<64x64xbf16>
    %42 = arith.truncf %28 : vector<64x32xf32> to vector<64x32xbf16>
    %cst_25 = arith.constant dense<0.000000e+00> : vector<64x32xf32>
    %43 = tpu.matmul %41, %42, %cst_25 {dimension_numbers = #tpu.dot_dimension_numbers<[1], [0], [0], [1], [0, 0, 1, 1], [], []>} : vector<64x64xbf16>, vector<64x32xbf16>, vector<64x32xf32> -> vector<64x32xf32>
    %44 = arith.mulf %43, %11 : vector<64x32xf32>
    %45 = vector.extract_strided_slice %44 {offsets = [0, 0], sizes = [16, 32], strides = [1, 1]} : vector<64x32xf32> to vector<16x32xf32>
    %46 = vector.extract_strided_slice %44 {offsets = [16, 0], sizes = [16, 32], strides = [1, 1]} : vector<64x32xf32> to vector<16x32xf32>
    %47 = arith.addf %45, %46 : vector<16x32xf32>
    %48 = vector.extract_strided_slice %44 {offsets = [32, 0], sizes = [16, 32], strides = [1, 1]} : vector<64x32xf32> to vector<16x32xf32>
    %49 = arith.addf %47, %48 : vector<16x32xf32>
    %50 = vector.extract_strided_slice %44 {offsets = [48, 0], sizes = [16, 32], strides = [1, 1]} : vector<64x32xf32> to vector<16x32xf32>
    %51 = arith.addf %49, %50 : vector<16x32xf32>
    %52 = arith.truncf %51 : vector<16x32xf32> to vector<16x32xbf16>
    %cst_26 = arith.constant dense<0.000000e+00> : vector<16x128xf32>
    %53 = tpu.matmul %52, %13, %cst_26 {dimension_numbers = #tpu.dot_dimension_numbers<[1], [0], [0], [1], [0, 0, 1, 1], [], []>} : vector<16x32xbf16>, vector<32x128xbf16>, vector<16x128xf32> -> vector<16x128xf32>
    %54 = vector.broadcast %6 : vector<1x128xf32> to vector<16x128xf32>
    %55 = arith.addf %53, %54 : vector<16x128xf32>
    %cst_27 = arith.constant 0.000000e+00 : f32
    %56 = vector.broadcast %cst_27 : f32 to vector<16x128xf32>
    %57 = arith.maximumf %55, %56 : vector<16x128xf32>
    %cst_28 = arith.constant dense<0.000000e+00> : vector<16x128xf32>
    %58 = tpu.matmul %52, %14, %cst_28 {dimension_numbers = #tpu.dot_dimension_numbers<[1], [0], [0], [1], [0, 0, 1, 1], [], []>} : vector<16x32xbf16>, vector<32x128xbf16>, vector<16x128xf32> -> vector<16x128xf32>
    %59 = vector.broadcast %7 : vector<1x128xf32> to vector<16x128xf32>
    %60 = arith.addf %58, %59 : vector<16x128xf32>
    %61 = arith.truncf %57 : vector<16x128xf32> to vector<16x128xbf16>
    %cst_29 = arith.constant dense<0.000000e+00> : vector<16x128xf32>
    %62 = tpu.matmul %61, %15, %cst_29 {dimension_numbers = #tpu.dot_dimension_numbers<[1], [0], [0], [1], [0, 0, 1, 1], [], []>} : vector<16x128xbf16>, vector<128x128xbf16>, vector<16x128xf32> -> vector<16x128xf32>
    %63 = vector.broadcast %8 : vector<1x128xf32> to vector<16x128xf32>
    %64 = arith.addf %62, %63 : vector<16x128xf32>
    %65 = arith.negf %64 : vector<16x128xf32>
    %66 = math.exp %65 : vector<16x128xf32>
    %cst_30 = arith.constant 1.000000e+00 : f32
    %67 = vector.broadcast %cst_30 : f32 to vector<16x128xf32>
    %68 = arith.addf %67, %66 : vector<16x128xf32>
    %69 = arith.divf %67, %68 : vector<16x128xf32>
    %70 = arith.select %21, %69, %60 : vector<16x128xi1>, vector<16x128xf32>
    %c0_31 = arith.constant 0 : index
    %c0_32 = arith.constant 0 : index
    %71 = vector.load %arg5[%c0_31, %c0_32] : memref<32x128xf32, #tpu.memory_space<vmem>>, vector<16x128xf32>
    tpu.vector_store %arg5[%c0_31, %c0_32], %70 {strides = array<i32>} : memref<32x128xf32, #tpu.memory_space<vmem>>, vector<16x128xf32>,
    %72 = vector.extract_strided_slice %2 {offsets = [64, 0], sizes = [64, 32], strides = [1, 1]} : vector<128x32xf32> to vector<64x32xf32>
    %73 = arith.addf %72, %3 : vector<64x32xf32>
    %cst_33 = arith.constant 0.000000e+00 : f32
    %74 = vector.broadcast %cst_33 : f32 to vector<64x32xf32>
    %75 = arith.maximumf %73, %74 : vector<64x32xf32>
    %76 = arith.truncf %75 : vector<64x32xf32> to vector<64x32xbf16>
    %cst_34 = arith.constant dense<0.000000e+00> : vector<64x32xf32>
    %77 = tpu.matmul %76, %12, %cst_34 {dimension_numbers = #tpu.dot_dimension_numbers<[1], [0], [0], [1], [0, 0, 1, 1], [], []>} : vector<64x32xbf16>, vector<32x32xbf16>, vector<64x32xf32> -> vector<64x32xf32>
    %78 = arith.addf %77, %5 : vector<64x32xf32>
    %cst_35 = arith.constant dense<0.000000e+00> : vector<64x64xf32>
    %79 = tpu.matmul %9, %76, %cst_35 {dimension_numbers = #tpu.dot_dimension_numbers<[1], [1], [0], [0], [0, 0, 1, 0], [], []>} : vector<64x32xbf16>, vector<64x32xbf16>, vector<64x64xf32> -> vector<64x64xf32>
    %80 = arith.addf %79, %4 : vector<64x64xf32>
    %cst_36 = arith.constant dense<0xFF800000> : vector<64xf32>
    %81 = vector.multi_reduction <maximumf>, %80, %cst_36 [1] : vector<64x64xf32> to vector<64xf32>
    %82 = vector.shape_cast %81 : vector<64xf32> to vector<64x1xf32>
    %83 = vector.broadcast %82 : vector<64x1xf32> to vector<64x64xf32>
    %84 = arith.subf %80, %83 : vector<64x64xf32>
    %85 = math.exp %84 : vector<64x64xf32>
    %cst_37 = arith.constant dense<0.000000e+00> : vector<64xf32>
    %86 = vector.multi_reduction <add>, %85, %cst_37 [1] : vector<64x64xf32> to vector<64xf32>
    %87 = vector.shape_cast %86 : vector<64xf32> to vector<64x1xf32>
    %88 = tpu.reciprocal %87 {approx = true} : vector<64x1xf32> -> vector<64x1xf32>
    %89 = vector.broadcast %88 : vector<64x1xf32> to vector<64x64xf32>
    %90 = arith.mulf %85, %89 : vector<64x64xf32>
    %91 = arith.truncf %90 : vector<64x64xf32> to vector<64x64xbf16>
    %92 = arith.truncf %78 : vector<64x32xf32> to vector<64x32xbf16>
    %cst_38 = arith.constant dense<0.000000e+00> : vector<64x32xf32>
    %93 = tpu.matmul %91, %92, %cst_38 {dimension_numbers = #tpu.dot_dimension_numbers<[1], [0], [0], [1], [0, 0, 1, 1], [], []>} : vector<64x64xbf16>, vector<64x32xbf16>, vector<64x32xf32> -> vector<64x32xf32>
    %94 = arith.mulf %93, %11 : vector<64x32xf32>
    %95 = vector.extract_strided_slice %94 {offsets = [0, 0], sizes = [16, 32], strides = [1, 1]} : vector<64x32xf32> to vector<16x32xf32>
    %96 = vector.extract_strided_slice %94 {offsets = [16, 0], sizes = [16, 32], strides = [1, 1]} : vector<64x32xf32> to vector<16x32xf32>
    %97 = arith.addf %95, %96 : vector<16x32xf32>
    %98 = vector.extract_strided_slice %94 {offsets = [32, 0], sizes = [16, 32], strides = [1, 1]} : vector<64x32xf32> to vector<16x32xf32>
    %99 = arith.addf %97, %98 : vector<16x32xf32>
    %100 = vector.extract_strided_slice %94 {offsets = [48, 0], sizes = [16, 32], strides = [1, 1]} : vector<64x32xf32> to vector<16x32xf32>
    %101 = arith.addf %99, %100 : vector<16x32xf32>
    %102 = arith.truncf %101 : vector<16x32xf32> to vector<16x32xbf16>
    %cst_39 = arith.constant dense<0.000000e+00> : vector<16x128xf32>
    %103 = tpu.matmul %102, %13, %cst_39 {dimension_numbers = #tpu.dot_dimension_numbers<[1], [0], [0], [1], [0, 0, 1, 1], [], []>} : vector<16x32xbf16>, vector<32x128xbf16>, vector<16x128xf32> -> vector<16x128xf32>
    %104 = vector.broadcast %6 : vector<1x128xf32> to vector<16x128xf32>
    %105 = arith.addf %103, %104 : vector<16x128xf32>
    %cst_40 = arith.constant 0.000000e+00 : f32
    %106 = vector.broadcast %cst_40 : f32 to vector<16x128xf32>
    %107 = arith.maximumf %105, %106 : vector<16x128xf32>
    %cst_41 = arith.constant dense<0.000000e+00> : vector<16x128xf32>
    %108 = tpu.matmul %102, %14, %cst_41 {dimension_numbers = #tpu.dot_dimension_numbers<[1], [0], [0], [1], [0, 0, 1, 1], [], []>} : vector<16x32xbf16>, vector<32x128xbf16>, vector<16x128xf32> -> vector<16x128xf32>
    %109 = vector.broadcast %7 : vector<1x128xf32> to vector<16x128xf32>
    %110 = arith.addf %108, %109 : vector<16x128xf32>
    %111 = arith.truncf %107 : vector<16x128xf32> to vector<16x128xbf16>
    %cst_42 = arith.constant dense<0.000000e+00> : vector<16x128xf32>
    %112 = tpu.matmul %111, %15, %cst_42 {dimension_numbers = #tpu.dot_dimension_numbers<[1], [0], [0], [1], [0, 0, 1, 1], [], []>} : vector<16x128xbf16>, vector<128x128xbf16>, vector<16x128xf32> -> vector<16x128xf32>
    %113 = vector.broadcast %8 : vector<1x128xf32> to vector<16x128xf32>
    %114 = arith.addf %112, %113 : vector<16x128xf32>
    %115 = arith.negf %114 : vector<16x128xf32>
    %116 = math.exp %115 : vector<16x128xf32>
    %cst_43 = arith.constant 1.000000e+00 : f32
    %117 = vector.broadcast %cst_43 : f32 to vector<16x128xf32>
    %118 = arith.addf %117, %116 : vector<16x128xf32>
    %119 = arith.divf %117, %118 : vector<16x128xf32>
    %120 = arith.select %21, %119, %110 : vector<16x128xi1>, vector<16x128xf32>
    %c16 = arith.constant 16 : index
    %c0_44 = arith.constant 0 : index
    %121 = vector.load %arg5[%c16, %c0_44] : memref<32x128xf32, #tpu.memory_space<vmem>>, vector<16x128xf32>
    tpu.vector_store %arg5[%c16, %c0_44], %120 {strides = array<i32>} : memref<32x128xf32, #tpu.memory_space<vmem>>, vector<16x128xf32>,
    return
  }
  func.func @transform_0(%arg0: i32) -> (i32, i32) {
    %c0_i32 = arith.constant 0 : i32
    %c0_i32_0 = arith.constant 0 : i32
    return %arg0, %c0_i32 : i32, i32
  }
  func.func @transform_1(%arg0: i32) -> (i32, i32) {
    %c0_i32 = arith.constant 0 : i32
    %c0_i32_0 = arith.constant 0 : i32
    %c0_i32_1 = arith.constant 0 : i32
    return %c0_i32, %c0_i32_0 : i32, i32
  }
  func.func @transform_2(%arg0: i32) -> (i32, i32) {
    %c0_i32 = arith.constant 0 : i32
    %c0_i32_0 = arith.constant 0 : i32
    %c0_i32_1 = arith.constant 0 : i32
    return %c0_i32, %c0_i32_0 : i32, i32
  }
  func.func @transform_3(%arg0: i32) -> (i32, i32) {
    %c0_i32 = arith.constant 0 : i32
    %c0_i32_0 = arith.constant 0 : i32
    %c0_i32_1 = arith.constant 0 : i32
    return %c0_i32, %c0_i32_0 : i32, i32
  }
  func.func @transform_4(%arg0: i32) -> (i32, i32) {
    %c0_i32 = arith.constant 0 : i32
    %c0_i32_0 = arith.constant 0 : i32
    return %arg0, %c0_i32 : i32, i32
  }
}

</mosaic_0001>

<llo_original>
// kernel: _det_bev_call.1
$region0: #{_det_bev_call.1}
  #allocation0 [shape = 'u32[]', space=smem, size = 0x4, offset = 0x4, fixed_abs, tag = 'smem constant byte address 0x4 - core index']
  #allocation1 [shape = 'u32[144,128]{1,0:T(1,128)}', space=vmem, size = 0x12000, scoped, tag = 'internal scratch']
  %s0 = inlined_call_operand.vmem [shape: bf16[128,384], index: 0, kind: input, shape index: {}]
  %s1 = inlined_call_operand.vmem [shape: bf16[384,32], index: 1, kind: input, shape index: {}]
  %s2 = inlined_call_operand.vmem [shape: bf16[352,128], index: 2, kind: input, shape index: {}]
  %s3 = inlined_call_operand.vmem [shape: f32[216,128], index: 3, kind: input, shape index: {}]
  %s4 = inlined_call_operand.vmem [shape: f32[32,128], index: 4, kind: output, shape index: {}]
  %s5 = sld [smem:[#allocation0]]
  $region26: #{_det_bev_call.1} parent=0
    _
  %s7 = ssub.s32 1, %s5
  %s8 = scalar_select 0, %s7, %s5
  // Predicated region
  $region2: #{_det_bev_call.1} parent=0 // pred_check
    _
  $region3: #{_det_bev_call.1} parent=0 // pred_check_branch
    %10 = sbr.rel (0) target = $region5
  $region4: #{_det_bev_call.1} parent=0 // pred_region
    _
  $region5: #{_det_bev_call.1} parent=0 // pred_fallthru
    _
  // Predicated region
  $region6: #{_det_bev_call.1} parent=0 // pred_check
    _
  $region7: #{_det_bev_call.1} parent=0 // pred_check_branch
    %12 = sbr.rel (0) target = $region9
  $region8: #{_det_bev_call.1} parent=0 // pred_region
    _
  $region9: #{_det_bev_call.1} parent=0 // pred_fallthru
    _
  // Predicated region
  $region10: #{_det_bev_call.1} parent=0 // pred_check
    _
  $region11: #{_det_bev_call.1} parent=0 // pred_check_branch
    %14 = sbr.rel (0) target = $region13
  $region12: #{_det_bev_call.1} parent=0 // pred_region
    _
  $region13: #{_det_bev_call.1} parent=0 // pred_fallthru
    _
  // Predicated region
  $region14: #{_det_bev_call.1} parent=0 // pred_check
    _
  $region15: #{_det_bev_call.1} parent=0 // pred_check_branch
    %16 = sbr.rel (0) target = $region17
  $region16: #{_det_bev_call.1} parent=0 // pred_region
    _
  $region17: #{_det_bev_call.1} parent=0 // pred_fallthru
    _
  %v18 = vld [vmem:[%s0] sm:$0xff]
  %v19 = vld [vmem:[%s0 + $0x8] sm:$0xf]
  %v20 = vld [vmem:[%s0 + $0xc] sm:$0xff]
  %v21 = vld [vmem:[%s0 + $0x14] sm:$0xf]
  %v22 = vld [vmem:[%s0 + $0x18] sm:$0xff]
  %v23 = vld [vmem:[%s0 + $0x20] sm:$0xf]
  %v24 = vld [vmem:[%s0 + $0x24] sm:$0xff]
  %v25 = vld [vmem:[%s0 + $0x2c] sm:$0xf]
  %v26 = vld [vmem:[%s0 + $0x30] sm:$0xff]
  %v27 = vld [vmem:[%s0 + $0x38] sm:$0xf]
  %v28 = vld [vmem:[%s0 + $0x3c] sm:$0xff]
  %v29 = vld [vmem:[%s0 + $0x44] sm:$0xf]
  %v30 = vld [vmem:[%s0 + $0x48] sm:$0xff]
  %v31 = vld [vmem:[%s0 + $0x50] sm:$0xf]
  %v32 = vld [vmem:[%s0 + $0x54] sm:$0xff]
  %v33 = vld [vmem:[%s0 + $0x5c] sm:$0xf]
  %v34 = vld [vmem:[%s0 + $0x60] sm:$0xff]
  %v35 = vld [vmem:[%s0 + $0x68] sm:$0xf]
  %v36 = vld [vmem:[%s0 + $0x6c] sm:$0xff]
  %v37 = vld [vmem:[%s0 + $0x74] sm:$0xf]
  %v38 = vld [vmem:[%s0 + $0x78] sm:$0xff]
  %v39 = vld [vmem:[%s0 + $0x80] sm:$0xf]
  %v40 = vld [vmem:[%s0 + $0x84] sm:$0xff]
  %v41 = vld [vmem:[%s0 + $0x8c] sm:$0xf]
  %v42 = vld [vmem:[%s0 + $0x90] sm:$0xff]
  %v43 = vld [vmem:[%s0 + $0x98] sm:$0xf]
  %v44 = vld [vmem:[%s0 + $0x9c] sm:$0xff]
  %v45 = vld [vmem:[%s0 + $0xa4] sm:$0xf]
  %v46 = vld [vmem:[%s0 + $0xa8] sm:$0xff]
  %v47 = vld [vmem:[%s0 + $0xb0] sm:$0xf]
  %v48 = vld [vmem:[%s0 + $0xb4] sm:$0xff]
  %v49 = vld [vmem:[%s0 + $0xbc] sm:$0xf]
  %v50 = vld [vmem:[%s1] sm:$0xf]
  %v51 = vld [vmem:[%s1 + $0x4] sm:$0xf]
  %v52 = vld [vmem:[%s1 + $0x8] sm:$0xf]
  %v53 = vld [vmem:[%s1 + $0xc] sm:$0xf]
  %v54 = vld [vmem:[%s1 + $0x10] sm:$0xf]
  %v55 = vld [vmem:[%s1 + $0x14] sm:$0xf]
  %v56 = vld [vmem:[%s1 + $0x18] sm:$0xf]
  %v57 = vld [vmem:[%s1 + $0x1c] sm:$0xf]
  %v58 = vld [vmem:[%s1 + $0x20] sm:$0xf]
  %v59 = vld [vmem:[%s1 + $0x24] sm:$0xf]
  %v60 = vld [vmem:[%s1 + $0x28] sm:$0xf]
  %v61 = vld [vmem:[%s1 + $0x2c] sm:$0xf]
  %v62 = vld [vmem:[%s1 + $0x30] sm:$0xf]
  %v63 = vld [vmem:[%s1 + $0x34] sm:$0xf]
  %v64 = vld [vmem:[%s1 + $0x38] sm:$0xf]
  %v65 = vld [vmem:[%s1 + $0x3c] sm:$0xf]
  %v66 = vld [vmem:[%s1 + $0x40] sm:$0xf]
  %v67 = vld [vmem:[%s1 + $0x44] sm:$0xf]
  %v68 = vld [vmem:[%s1 + $0x48] sm:$0xf]
  %v69 = vld [vmem:[%s1 + $0x4c] sm:$0xf]
  %v70 = vld [vmem:[%s1 + $0x50] sm:$0xf]
  %v71 = vld [vmem:[%s1 + $0x54] sm:$0xf]
  %v72 = vld [vmem:[%s1 + $0x58] sm:$0xf]
  %v73 = vld [vmem:[%s1 + $0x5c] sm:$0xf]
  %v74 = vld [vmem:[%s1 + $0x60] sm:$0xf]
  %v75 = vld [vmem:[%s1 + $0x64] sm:$0xf]
  %v76 = vld [vmem:[%s1 + $0x68] sm:$0xf]
  %v77 = vld [vmem:[%s1 + $0x6c] sm:$0xf]
  %v78 = vld [vmem:[%s1 + $0x70] sm:$0xf]
  %v79 = vld [vmem:[%s1 + $0x74] sm:$0xf]
  %v80 = vld [vmem:[%s1 + $0x78] sm:$0xf]
  %v81 = vld [vmem:[%s1 + $0x7c] sm:$0xf]
  %v82 = vld [vmem:[%s1 + $0x80] sm:$0xf]
  %v83 = vld [vmem:[%s1 + $0x84] sm:$0xf]
  %v84 = vld [vmem:[%s1 + $0x88] sm:$0xf]
  %v85 = vld [vmem:[%s1 + $0x8c] sm:$0xf]
  %v86 = vld [vmem:[%s1 + $0x90] sm:$0xf]
  %v87 = vld [vmem:[%s1 + $0x94] sm:$0xf]
  %v88 = vld [vmem:[%s1 + $0x98] sm:$0xf]
  %v89 = vld [vmem:[%s1 + $0x9c] sm:$0xf]
  %v90 = vld [vmem:[%s1 + $0xa0] sm:$0xf]
  %v91 = vld [vmem:[%s1 + $0xa4] sm:$0xf]
  %v92 = vld [vmem:[%s1 + $0xa8] sm:$0xf]
  %v93 = vld [vmem:[%s1 + $0xac] sm:$0xf]
  %v94 = vld [vmem:[%s1 + $0xb0] sm:$0xf]
  %v95 = vld [vmem:[%s1 + $0xb4] sm:$0xf]
  %v96 = vld [vmem:[%s1 + $0xb8] sm:$0xf]
  %v97 = vld [vmem:[%s1 + $0xbc] sm:$0xf]
  %v130 = vunpack.c.l.b16 %v18
  %v131 = vunpack.c.h.b16 %v18
  %v132 = vunpack.c.l.b16 %v19
  %v133 = vunpack.c.l.b16 %v20
  %v134 = vunpack.c.h.b16 %v20
  %v135 = vunpack.c.l.b16 %v21
  %v136 = vunpack.c.l.b16 %v22
  %v137 = vunpack.c.h.b16 %v22
  %v138 = vunpack.c.l.b16 %v23
  %v139 = vunpack.c.l.b16 %v24
  %v140 = vunpack.c.h.b16 %v24
  %v141 = vunpack.c.l.b16 %v25
  %v142 = vunpack.c.l.b16 %v26
  %v143 = vunpack.c.h.b16 %v26
  %v144 = vunpack.c.l.b16 %v27
  %v145 = vunpack.c.l.b16 %v28
  %v146 = vunpack.c.h.b16 %v28
  %v147 = vunpack.c.l.b16 %v29
  %v148 = vunpack.c.l.b16 %v30
  %v149 = vunpack.c.h.b16 %v30
  %v150 = vunpack.c.l.b16 %v31
  %v151 = vunpack.c.l.b16 %v32
  %v152 = vunpack.c.h.b16 %v32
  %v153 = vunpack.c.l.b16 %v33
  %v154 = vunpack.c.l.b16 %v34
  %v155 = vunpack.c.h.b16 %v34
  %v156 = vunpack.c.l.b16 %v35
  %v157 = vunpack.c.l.b16 %v36
  %v158 = vunpack.c.h.b16 %v36
  %v159 = vunpack.c.l.b16 %v37
  %v160 = vunpack.c.l.b16 %v38
  %v161 = vunpack.c.h.b16 %v38
  %v162 = vunpack.c.l.b16 %v39
  %v163 = vunpack.c.l.b16 %v40
  %v164 = vunpack.c.h.b16 %v40
  %v165 = vunpack.c.l.b16 %v41
  %v166 = vunpack.c.l.b16 %v42
  %v167 = vunpack.c.h.b16 %v42
  %v168 = vunpack.c.l.b16 %v43
  %v169 = vunpack.c.l.b16 %v44
  %v170 = vunpack.c.h.b16 %v44
  %v171 = vunpack.c.l.b16 %v45
  %v172 = vunpack.c.l.b16 %v46
  %v173 = vunpack.c.h.b16 %v46
  %v174 = vunpack.c.l.b16 %v47
  %v175 = vunpack.c.l.b16 %v48
  %v176 = vunpack.c.h.b16 %v48
  %v177 = vunpack.c.l.b16 %v49
  %v178 = vpack.c.b16 %v133, %v130
  %v179 = vpack.c.b16 %v134, %v131
  %v180 = vpack.c.b16 %v135, %v132
  %v181 = vpack.c.b16 %v139, %v136
  %v182 = vpack.c.b16 %v140, %v137
  %v183 = vpack.c.b16 %v141, %v138
  %v184 = vpack.c.b16 %v145, %v142
  %v185 = vpack.c.b16 %v146, %v143
  %v186 = vpack.c.b16 %v147, %v144
  %v187 = vpack.c.b16 %v151, %v148
  %v188 = vpack.c.b16 %v152, %v149
  %v189 = vpack.c.b16 %v153, %v150
  %v190 = vpack.c.b16 %v157, %v154
  %v191 = vpack.c.b16 %v158, %v155
  %v192 = vpack.c.b16 %v159, %v156
  %v193 = vpack.c.b16 %v163, %v160
  %v194 = vpack.c.b16 %v164, %v161
  %v195 = vpack.c.b16 %v165, %v162
  %v196 = vpack.c.b16 %v169, %v166
  %v197 = vpack.c.b16 %v170, %v167
  %v198 = vpack.c.b16 %v171, %v168
  %v199 = vpack.c.b16 %v175, %v172
  %v200 = vpack.c.b16 %v176, %v173
  %v201 = vpack.c.b16 %v177, %v174
  %v274 = vunpack.c.l.b16 %v50
  %v275 = vunpack.c.l.b16 %v51
  %v276 = vunpack.c.l.b16 %v52
  %v277 = vunpack.c.l.b16 %v53
  %v278 = vunpack.c.l.b16 %v54
  %v279 = vunpack.c.l.b16 %v55
  %v280 = vunpack.c.l.b16 %v56
  %v281 = vunpack.c.l.b16 %v57
  %v282 = vunpack.c.l.b16 %v58
  %v283 = vunpack.c.l.b16 %v59
  %v284 = vunpack.c.l.b16 %v60
  %v285 = vunpack.c.l.b16 %v61
  %v286 = vunpack.c.l.b16 %v62
  %v287 = vunpack.c.l.b16 %v63
  %v288 = vunpack.c.l.b16 %v64
  %v289 = vunpack.c.l.b16 %v65
  %v290 = vunpack.c.l.b16 %v66
  %v291 = vunpack.c.l.b16 %v67
  %v292 = vunpack.c.l.b16 %v68
  %v293 = vunpack.c.l.b16 %v69
  %v294 = vunpack.c.l.b16 %v70
  %v295 = vunpack.c.l.b16 %v71
  %v296 = vunpack.c.l.b16 %v72
  %v297 = vunpack.c.l.b16 %v73
  %v298 = vunpack.c.l.b16 %v74
  %v299 = vunpack.c.l.b16 %v75
  %v300 = vunpack.c.l.b16 %v76
  %v301 = vunpack.c.l.b16 %v77
  %v302 = vunpack.c.l.b16 %v78
  %v303 = vunpack.c.l.b16 %v79
  %v304 = vunpack.c.l.b16 %v80
  %v305 = vunpack.c.l.b16 %v81
  %v306 = vunpack.c.l.b16 %v82
  %v307 = vunpack.c.l.b16 %v83
  %v308 = vunpack.c.l.b16 %v84
  %v309 = vunpack.c.l.b16 %v85
  %v310 = vunpack.c.l.b16 %v86
  %v311 = vunpack.c.l.b16 %v87
  %v312 = vunpack.c.l.b16 %v88
  %v313 = vunpack.c.l.b16 %v89
  %v314 = vunpack.c.l.b16 %v90
  %v315 = vunpack.c.l.b16 %v91
  %v316 = vunpack.c.l.b16 %v92
  %v317 = vunpack.c.l.b16 %v93
  %v318 = vunpack.c.l.b16 %v94
  %v319 = vunpack.c.l.b16 %v95
  %v320 = vunpack.c.l.b16 %v96
  %v321 = vunpack.c.l.b16 %v97
  %v322 = vpack.c.b16 %v275, %v274
  %v323 = vpack.c.b16 %v277, %v276
  %v324 = vpack.c.b16 %v279, %v278
  %v325 = vpack.c.b16 %v281, %v280
  %v326 = vpack.c.b16 %v283, %v282
  %v327 = vpack.c.b16 %v285, %v284
  %v328 = vpack.c.b16 %v287, %v286
  %v329 = vpack.c.b16 %v289, %v288
  %v330 = vpack.c.b16 %v291, %v290
  %v331 = vpack.c.b16 %v293, %v292
  %v332 = vpack.c.b16 %v295, %v294
  %v333 = vpack.c.b16 %v297, %v296
  %v334 = vpack.c.b16 %v299, %v298
  %v335 = vpack.c.b16 %v301, %v300
  %v336 = vpack.c.b16 %v303, %v302
  %v337 = vpack.c.b16 %v305, %v304
  %v338 = vpack.c.b16 %v307, %v306
  %v339 = vpack.c.b16 %v309, %v308
  %v340 = vpack.c.b16 %v311, %v310
  %v341 = vpack.c.b16 %v313, %v312
  %v342 = vpack.c.b16 %v315, %v314
  %v343 = vpack.c.b16 %v317, %v316
  %v344 = vpack.c.b16 %v319, %v318
  %v345 = vpack.c.b16 %v321, %v320
  %370 = vmatprep.subr.bf16.mxu0 0
  %371 = vmatpush1.bf16.msra.mxu0 %v322
  %372 = vmatprep.subr.bf16.mxu0 0
  %373 = vmatpush1.bf16.msra.mxu0 %v323
  %374 = vmatprep.subr.bf16.mxu0 0
  %375 = vmatpush1.bf16.msra.mxu0 %v324
  %376 = vmatprep.subr.bf16.mxu0 0
  %377 = vmatpush1.bf16.msra.mxu0 %v325
  %378 = vmatprep.subr.bf16.mxu0 0
  %379 = vmatpush1.bf16.msra.mxu0 %v326
  %380 = vmatprep.subr.bf16.mxu0 0
  %381 = vmatpush1.bf16.msra.mxu0 %v327
  %382 = vmatprep.subr.bf16.mxu0 0
  %383 = vmatpush1.bf16.msra.mxu0 %v328
  %384 = vmatprep.subr.bf16.mxu0 0
  %385 = vmatpush1.bf16.msra.mxu0 %v329
  %386 = vmatprep.subr.bf16.mxu0 0
  %387 = vmatpush1.bf16.msra.mxu0 %v330
  %388 = vmatprep.subr.bf16.mxu0 0
  %389 = vmatpush1.bf16.msra.mxu0 %v331
  %390 = vmatprep.subr.bf16.mxu0 0
  %391 = vmatpush1.bf16.msra.mxu0 %v332
  %392 = vmatprep.subr.bf16.mxu0 0
  %393 = vmatpush1.bf16.msra.mxu0 %v333
  %394 = vmatprep.subr.bf16.mxu0 0
  %395 = vmatpush1.bf16.msra.mxu0 %v334
  %396 = vmatprep.subr.bf16.mxu0 0
  %397 = vmatpush1.bf16.msra.mxu0 %v335
  %398 = vmatprep.subr.bf16.mxu0 0
  %399 = vmatpush1.bf16.msra.mxu0 %v336
  %400 = vmatprep.subr.bf16.mxu0 0
  %401 = vmatpush1.bf16.msra.mxu0 %v337
  %402 = vmatprep.mubr.bf16.mxu0 %v179
  %403 = vmatmul.mubr.bf16.gmra.mrb[0].mxu0 %v178
  %v404 = vpop.f32.mrb[0].mxu0
  %v405 = vadd.f32 0.0, %v404
  %v406 = vpop.f32.mrb[0].mxu0
  %v407 = vpop.f32.mrb[0].mxu0
  %v408 = vadd.f32 0.0, %v407
  %v409 = vpop.f32.mrb[0].mxu0
  %410 = vmatprep.mubr.bf16.mxu0 %v182
  %411 = vmatmul.mubr.bf16.gmra.mrb[0].mxu0 %v181
  %v412 = vpop.f32.mrb[0].mxu0
  %v413 = vadd.f32 0.0, %v412
  %v414 = vpop.f32.mrb[0].mxu0
  %v415 = vpop.f32.mrb[0].mxu0
  %v416 = vadd.f32 0.0, %v415
  %v417 = vpop.f32.mrb[0].mxu0
  %418 = vmatprep.mubr.bf16.mxu0 %v185
  %419 = vmatmul.mubr.bf16.gmra.mrb[0].mxu0 %v184
  %v420 = vpop.f32.mrb[0].mxu0
  %v421 = vadd.f32 0.0, %v420
  %v422 = vpop.f32.mrb[0].mxu0
  %v423 = vpop.f32.mrb[0].mxu0
  %v424 = vadd.f32 0.0, %v423
  %v425 = vpop.f32.mrb[0].mxu0
  %426 = vmatprep.mubr.bf16.mxu0 %v188
  %427 = vmatmul.mubr.bf16.gmra.mrb[0].mxu0 %v187
  %v428 = vpop.f32.mrb[0].mxu0
  %v429 = vadd.f32 0.0, %v428
  %v430 = vpop.f32.mrb[0].mxu0
  %v431 = vpop.f32.mrb[0].mxu0
  %v432 = vadd.f32 0.0, %v431
  %v433 = vpop.f32.mrb[0].mxu0
  %434 = vmatprep.mubr.bf16.mxu0 %v191
  %435 = vmatmul.mubr.bf16.gmra.mrb[0].mxu0 %v190
  %v436 = vpop.f32.mrb[0].mxu0
  %v437 = vadd.f32 0.0, %v436
  %v438 = vpop.f32.mrb[0].mxu0
  %v439 = vpop.f32.mrb[0].mxu0
  %v440 = vadd.f32 0.0, %v439
  %v441 = vpop.f32.mrb[0].mxu0
  %442 = vmatprep.mubr.bf16.mxu0 %v194
  %443 = vmatmul.mubr.bf16.gmra.mrb[0].mxu0 %v193
  %v444 = vpop.f32.mrb[0].mxu0
  %v445 = vadd.f32 0.0, %v444
  %v446 = vpop.f32.mrb[0].mxu0
  %v447 = vpop.f32.mrb[0].mxu0
  %v448 = vadd.f32 0.0, %v447
  %v449 = vpop.f32.mrb[0].mxu0
  %450 = vmatprep.mubr.bf16.mxu0 %v197
  %451 = vmatmul.mubr.bf16.gmra.mrb[0].mxu0 %v196
  %v452 = vpop.f32.mrb[0].mxu0
  %v453 = vadd.f32 0.0, %v452
  %v454 = vpop.f32.mrb[0].mxu0
  %v455 = vpop.f32.mrb[0].mxu0
  %v456 = vadd.f32 0.0, %v455
  %v457 = vpop.f32.mrb[0].mxu0
  %458 = vmatprep.mubr.bf16.mxu0 %v200
  %459 = vmatmul.mubr.bf16.gmra.mrb[0].mxu0 %v199
  %v460 = vpop.f32.mrb[0].mxu0
  %v461 = vadd.f32 0.0, %v460
  %v462 = vpop.f32.mrb[0].mxu0
  %v463 = vpop.f32.mrb[0].mxu0
  %v464 = vadd.f32 0.0, %v463
  %v465 = vpop.f32.mrb[0].mxu0
  %466 = vdwg.mxu0
  %467 = vmatprep.subr.bf16.mxu0 0
  %468 = vmatpush1.bf16.msra.mxu0 %v338
  %469 = vmatprep.subr.bf16.mxu0 0
  %470 = vmatpush1.bf16.msra.mxu0 %v339
  %471 = vmatprep.subr.bf16.mxu0 0
  %472 = vmatpush1.bf16.msra.mxu0 %v340
  %473 = vmatprep.subr.bf16.mxu0 0
  %474 = vmatpush1.bf16.msra.mxu0 %v341
  %475 = vmatprep.subr.bf16.mxu0 0
  %476 = vmatpush1.bf16.msra.mxu0 %v342
  %477 = vmatprep.subr.bf16.mxu0 0
  %478 = vmatpush1.bf16.msra.mxu0 %v343
  %479 = vmatprep.subr.bf16.mxu0 0
  %480 = vmatpush1.bf16.msra.mxu0 %v344
  %481 = vmatprep.subr.bf16.mxu0 0
  %482 = vmatpush1.bf16.msra.mxu0 %v345
  %483 = vmatprep.subr.bf16.mxu0 0
  %484 = vmatpush1.bf16.msra.mxu0 0
  %485 = vmatprep.subr.bf16.mxu0 0
  %486 = vmatpush1.bf16.msra.mxu0 0
  %487 = vmatprep.subr.bf16.mxu0 0
  %488 = vmatpush1.bf16.msra.mxu0 0
  %489 = vmatprep.subr.bf16.mxu0 0
  %490 = vmatpush1.bf16.msra.mxu0 0
  %491 = vmatprep.subr.bf16.mxu0 0
  %492 = vmatpush1.bf16.msra.mxu0 0
  %493 = vmatprep.subr.bf16.mxu0 0
  %494 = vmatpush1.bf16.msra.mxu0 0
  %495 = vmatprep.subr.bf16.mxu0 0
  %496 = vmatpush1.bf16.msra.mxu0 0
  %497 = vmatprep.subr.bf16.mxu0 0
  %498 = vmatpush1.bf16.msra.mxu0 0
  %499 = vmatprep.mubr.bf16.mxu0 0
  %500 = vmatmul.mubr.bf16.gmra.mrb[0].mxu0 %v180
  %v501 = vpop.f32.mrb[0].mxu0
  %v502 = vadd.f32 %v405, %v501
  %v503 = vpop.f32.mrb[0].mxu0
  %v504 = vpop.f32.mrb[0].mxu0
  %v505 = vadd.f32 %v408, %v504
  %v506 = vpop.f32.mrb[0].mxu0
  %507 = vmatprep.mubr.bf16.mxu0 0
  %508 = vmatmul.mubr.bf16.gmra.mrb[0].mxu0 %v183
  %v509 = vpop.f32.mrb[0].mxu0
  %v510 = vadd.f32 %v413, %v509
  %v511 = vpop.f32.mrb[0].mxu0
  %v512 = vpop.f32.mrb[0].mxu0
  %v513 = vadd.f32 %v416, %v512
  %v514 = vpop.f32.mrb[0].mxu0
  %515 = vmatprep.mubr.bf16.mxu0 0
  %516 = vmatmul.mubr.bf16.gmra.mrb[0].mxu0 %v186
  %v517 = vpop.f32.mrb[0].mxu0
  %v518 = vadd.f32 %v421, %v517
  %v519 = vpop.f32.mrb[0].mxu0
  %v520 = vpop.f32.mrb[0].mxu0
  %v521 = vadd.f32 %v424, %v520
  %v522 = vpop.f32.mrb[0].mxu0
  %523 = vmatprep.mubr.bf16.mxu0 0
  %524 = vmatmul.mubr.bf16.gmra.mrb[0].mxu0 %v189
  %v525 = vpop.f32.mrb[0].mxu0
  %v526 = vadd.f32 %v429, %v525
  %v527 = vpop.f32.mrb[0].mxu0
  %v528 = vpop.f32.mrb[0].mxu0
  %v529 = vadd.f32 %v432, %v528
  %v530 = vpop.f32.mrb[0].mxu0
  %531 = vmatprep.mubr.bf16.mxu0 0
  %532 = vmatmul.mubr.bf16.gmra.mrb[0].mxu0 %v192
  %v533 = vpop.f32.mrb[0].mxu0
  %v534 = vadd.f32 %v437, %v533
  %v535 = vpop.f32.mrb[0].mxu0
  %v536 = vpop.f32.mrb[0].mxu0
  %v537 = vadd.f32 %v440, %v536
  %v538 = vpop.f32.mrb[0].mxu0
  %539 = vmatprep.mubr.bf16.mxu0 0
  %540 = vmatmul.mubr.bf16.gmra.mrb[0].mxu0 %v195
  %v541 = vpop.f32.mrb[0].mxu0
  %v542 = vadd.f32 %v445, %v541
  %v543 = vpop.f32.mrb[0].mxu0
  %v544 = vpop.f32.mrb[0].mxu0
  %v545 = vadd.f32 %v448, %v544
  %v546 = vpop.f32.mrb[0].mxu0
  %547 = vmatprep.mubr.bf16.mxu0 0
  %548 = vmatmul.mubr.bf16.gmra.mrb[0].mxu0 %v198
  %v549 = vpop.f32.mrb[0].mxu0
  %v550 = vadd.f32 %v453, %v549
  %v551 = vpop.f32.mrb[0].mxu0
  %v552 = vpop.f32.mrb[0].mxu0
  %v553 = vadd.f32 %v456, %v552
  %v554 = vpop.f32.mrb[0].mxu0
  %555 = vmatprep.mubr.bf16.mxu0 0
  %556 = vmatmul.mubr.bf16.gmra.mrb[0].mxu0 %v201
  %v557 = vpop.f32.mrb[0].mxu0
  %v558 = vadd.f32 %v461, %v557
  %v559 = vpop.f32.mrb[0].mxu0
  %v560 = vpop.f32.mrb[0].mxu0
  %v561 = vadd.f32 %v464, %v560
  %v562 = vpop.f32.mrb[0].mxu0
  %563 = vdwg.mxu0
  %v564 = vld [vmem:[%s3] sm:$0xff]
  %v565 = vld [vmem:[%s3 + $0x8] sm:$0xff]
  %v566 = vld [vmem:[%s3 + $0x10] sm:$0xff]
  %v567 = vld [vmem:[%s3 + $0x18] sm:$0xff]
  %v568 = vld [vmem:[%s3 + $0x20] sm:$0xff]
  %v569 = vld [vmem:[%s3 + $0x28] sm:$0xff]
  %v570 = vld [vmem:[%s3 + $0x30] sm:$0xff]
  %v571 = vld [vmem:[%s3 + $0x38] sm:$0xff]
  %v572 = vld [vmem:[%s3 + $0x40] sm:$0xff]
  %v573 = vld [vmem:[%s3 + $0x48] sm:$0xff]
  %v574 = vld [vmem:[%s3 + $0x50] sm:$0xff]
  %v575 = vld [vmem:[%s3 + $0x58] sm:$0xff]
  %v576 = vld [vmem:[%s3 + $0x60] sm:$0xff]
  %v577 = vld [vmem:[%s3 + $0x68] sm:$0xff]
  %v578 = vld [vmem:[%s3 + $0x70] sm:$0xff]
  %v579 = vld [vmem:[%s3 + $0x78] sm:$0xff]
  %v580 = vld [vmem:[%s3 + $0x80] sm:$0xff]
  %v581 = vld [vmem:[%s3 + $0x88] sm:$0xff]
  %v582 = vld [vmem:[%s3 + $0x90] sm:$0xff]
  %v583 = vld [vmem:[%s3 + $0x98] sm:$0xff]
  %v584 = vld [vmem:[%s3 + $0xa0] sm:$0xff]
  %v585 = vld [vmem:[%s3 + $0xa8] sm:$0xff]
  %v586 = vld [vmem:[%s3 + $0xb0] sm:$0xff]
  %v587 = vld [vmem:[%s3 + $0xb8] sm:$0xff]
  %v588 = vld [vmem:[%s3 + $0xc0] sm:$0x1]
  %v589 = vld [vmem:[%s3 + $0xc8] sm:$0x1]
  %v590 = vld [vmem:[%s3 + $0xd0] sm:$0x1]
  %v591 = vld [vmem:[%s2] sm:$0xf]
  %v592 = vld [vmem:[%s2 + $0x4] sm:$0xf]
  %v593 = vld [vmem:[%s2 + $0x8] sm:$0xf]
  %v594 = vld [vmem:[%s2 + $0xc] sm:$0xf]
  %v595 = vld [vmem:[%s2 + $0x10] sm:$0xf]
  %v596 = vld [vmem:[%s2 + $0x14] sm:$0xf]
  %v597 = vld [vmem:[%s2 + $0x18] sm:$0xf]
  %v598 = vld [vmem:[%s2 + $0x1c] sm:$0xf]
  %v599 = vld [vmem:[%s2 + $0x20] sm:$0xf]
  %v600 = vld [vmem:[%s2 + $0x24] sm:$0xf]
  %v601 = vld [vmem:[%s2 + $0x28] sm:$0xf]
  %v602 = vld [vmem:[%s2 + $0x2c] sm:$0xf]
  %v603 = vld [vmem:[%s2 + $0x30] sm:$0xf]
  %v604 = vld [vmem:[%s2 + $0x34] sm:$0xf]
  %v605 = vld [vmem:[%s2 + $0x38] sm:$0xf]
  %v606 = vld [vmem:[%s2 + $0x3c] sm:$0xf]
  %v607 = vunpack.c.l.bf16 %v599
  %v608 = vunpack.c.l.bf16 %v600
  %v609 = vunpack.c.l.bf16 %v601
  %v610 = vunpack.c.l.bf16 %v602
  %v611 = vunpack.c.l.bf16 %v603
  %v612 = vunpack.c.l.bf16 %v604
  %v613 = vunpack.c.l.bf16 %v605
  %v614 = vunpack.c.l.bf16 %v606
  %v615 = vld [vmem:[%s2 + $0x40] sm:$0xf]
  %v616 = vld [vmem:[%s2 + $0x44] sm:$0xf]
  %v617 = vld [vmem:[%s2 + $0x48] sm:$0xf]
  %v618 = vld [vmem:[%s2 + $0x4c] sm:$0xf]
  %v619 = vld [vmem:[%s2 + $0x50] sm:$0xf]
  %v620 = vld [vmem:[%s2 + $0x54] sm:$0xf]
  %v621 = vld [vmem:[%s2 + $0x58] sm:$0xf]
  %v622 = vld [vmem:[%s2 + $0x5c] sm:$0xf]
  %v623 = vld [vmem:[%s2 + $0x60] sm:$0xf]
  %v624 = vld [vmem:[%s2 + $0x64] sm:$0xf]
  %v625 = vld [vmem:[%s2 + $0x68] sm:$0xf]
  %v626 = vld [vmem:[%s2 + $0x6c] sm:$0xf]
  %v627 = vld [vmem:[%s2 + $0x70] sm:$0xf]
  %v628 = vld [vmem:[%s2 + $0x74] sm:$0xf]
  %v629 = vld [vmem:[%s2 + $0x78] sm:$0xf]
  %v630 = vld [vmem:[%s2 + $0x7c] sm:$0xf]
  %v631 = vld [vmem:[%s2 + $0x80] sm:$0xf]
  %v632 = vld [vmem:[%s2 + $0x84] sm:$0xf]
  %v633 = vld [vmem:[%s2 + $0x88] sm:$0xf]
  %v634 = vld [vmem:[%s2 + $0x8c] sm:$0xf]
  %v635 = vld [vmem:[%s2 + $0x90] sm:$0xf]
  %v636 = vld [vmem:[%s2 + $0x94] sm:$0xf]
  %v637 = vld [vmem:[%s2 + $0x98] sm:$0xf]
  %v638 = vld [vmem:[%s2 + $0x9c] sm:$0xf]
  %v639 = vld [vmem:[%s2 + $0xa0] sm:$0xf]
  %v640 = vld [vmem:[%s2 + $0xa4] sm:$0xf]
  %v641 = vld [vmem:[%s2 + $0xa8] sm:$0xf]
  %v642 = vld [vmem:[%s2 + $0xac] sm:$0xf]
  %v643 = vlaneseq
  %v644 = vand.u32 %v643, 127
  %vm645 = vcmp.ge.s32.totalorder %v644, 11
  %vm646 = vcmp.lt.s32.totalorder %v644, 20
  %vm647 = vmand %vm645, %vm646
  %v648 = vadd.f32 %v502, %v564
  %v649 = vadd.f32 %v505, %v565
  %v650 = vadd.f32 %v510, %v566
  %v651 = vadd.f32 %v513, %v567
  %v652 = vadd.f32 %v518, %v568
  %v653 = vadd.f32 %v521, %v569
  %v654 = vadd.f32 %v526, %v570
  %v655 = vadd.f32 %v529, %v571
  %v656 = vmax.f32 %v648, 0.0
  %v657 = vmax.f32 %v649, 0.0
  %v658 = vmax.f32 %v650, 0.0
  %v659 = vmax.f32 %v651, 0.0
  %v660 = vmax.f32 %v652, 0.0
  %v661 = vmax.f32 %v653, 0.0
  %v662 = vmax.f32 %v654, 0.0
  %v663 = vmax.f32 %v655, 0.0
  %v664 = vpack.c.bf16 %v657, %v656
  %v665 = vpack.c.bf16 %v659, %v658
  %v666 = vpack.c.bf16 %v661, %v660
  %v667 = vpack.c.bf16 %v663, %v662
  %v672 = vunpack.c.l.b16 %v615
  %v673 = vunpack.c.l.b16 %v616
  %v674 = vunpack.c.l.b16 %v617
  %v675 = vunpack.c.l.b16 %v618
  %v676 = vpack.c.b16 %v673, %v672
  %v677 = vpack.c.b16 %v675, %v674
  %vm680 = vcmask 261120
  %v682 = vsel %vm680, %v664, 0
  %v685 = vsel %vm680, %v665, 0
  %v688 = vsel %vm680, %v666, 0
  %v691 = vsel %vm680, %v667, 0
  %693 = vmatprep.subr.bf16.mxu0 0
  %694 = vmatpush1.bf16.msra.mxu0 %v676
  %695 = vmatprep.subr.bf16.mxu0 0
  %696 = vmatpush1.bf16.msra.mxu0 %v677
  %697 = vmatprep.subr.bf16.mxu0 0
  %698 = vmatpush1.bf16.msra.mxu0 0
  %699 = vmatprep.subr.bf16.mxu0 0
  %700 = vmatpush1.bf16.msra.mxu0 0
  %701 = vmatprep.subr.bf16.mxu0 0
  %702 = vmatpush1.bf16.msra.mxu0 0
  %703 = vmatprep.subr.bf16.mxu0 0
  %704 = vmatpush1.bf16.msra.mxu0 0
  %705 = vmatprep.subr.bf16.mxu0 0
  %706 = vmatpush1.bf16.msra.mxu0 0
  %707 = vmatprep.subr.bf16.mxu0 0
  %708 = vmatpush1.bf16.msra.mxu0 0
  %709 = vmatprep.subr.bf16.mxu0 0
  %710 = vmatpush1.bf16.msra.mxu0 0
  %711 = vmatprep.subr.bf16.mxu0 0
  %712 = vmatpush1.bf16.msra.mxu0 0
  %713 = vmatprep.subr.bf16.mxu0 0
  %714 = vmatpush1.bf16.msra.mxu0 0
  %715 = vmatprep.subr.bf16.mxu0 0
  %716 = vmatpush1.bf16.msra.mxu0 0
  %717 = vmatprep.subr.bf16.mxu0 0
  %718 = vmatpush1.bf16.msra.mxu0 0
  %719 = vmatprep.subr.bf16.mxu0 0
  %720 = vmatpush1.bf16.msra.mxu0 0
  %721 = vmatprep.subr.bf16.mxu0 0
  %722 = vmatpush1.bf16.msra.mxu0 0
  %723 = vmatprep.subr.bf16.mxu0 0
  %724 = vmatpush1.bf16.msra.mxu0 0
  %725 = vmatprep.mubr.bf16.mxu0 0
  %726 = vmatmul.mubr.bf16.gmra.mrb[0].mxu0 %v682
  %v727 = vpop.f32.mrb[0].mxu0
  %v728 = vadd.f32 %v580, %v727
  %v729 = vpop.f32.mrb[0].mxu0
  %v730 = vpop.f32.mrb[0].mxu0
  %v731 = vadd.f32 %v581, %v730
  %v732 = vpop.f32.mrb[0].mxu0
  %733 = vmatprep.mubr.bf16.mxu0 0
  %734 = vmatmul.mubr.bf16.gmra.mrb[0].mxu0 %v685
  %v735 = vpop.f32.mrb[0].mxu0
  %v736 = vadd.f32 %v582, %v735
  %v737 = vpop.f32.mrb[0].mxu0
  %v738 = vpop.f32.mrb[0].mxu0
  %v739 = vadd.f32 %v583, %v738
  %v740 = vpop.f32.mrb[0].mxu0
  %741 = vmatprep.mubr.bf16.mxu0 0
  %742 = vmatmul.mubr.bf16.gmra.mrb[0].mxu0 %v688
  %v743 = vpop.f32.mrb[0].mxu0
  %v744 = vadd.f32 %v584, %v743
  %v745 = vpop.f32.mrb[0].mxu0
  %v746 = vpop.f32.mrb[0].mxu0
  %v747 = vadd.f32 %v585, %v746
  %v748 = vpop.f32.mrb[0].mxu0
  %749 = vmatprep.mubr.bf16.mxu0 0
  %750 = vmatmul.mubr.bf16.gmra.mrb[0].mxu0 %v691
  %v751 = vpop.f32.mrb[0].mxu0
  %v752 = vadd.f32 %v586, %v751
  %v753 = vpop.f32.mrb[0].mxu0
  %v754 = vpop.f32.mrb[0].mxu0
  %v755 = vadd.f32 %v587, %v754
  %v756 = vpop.f32.mrb[0].mxu0
  %757 = vdwg.mxu0
  %v766 = vunpack.c.l.b16 %v591
  %v767 = vunpack.c.l.b16 %v592
  %v768 = vunpack.c.l.b16 %v593
  %v769 = vunpack.c.l.b16 %v594
  %v770 = vunpack.c.l.b16 %v595
  %v771 = vunpack.c.l.b16 %v596
  %v772 = vunpack.c.l.b16 %v597
  %v773 = vunpack.c.l.b16 %v598
  %v774 = vpack.c.b16 %v767, %v766
  %v775 = vpack.c.b16 %v769, %v768
  %v776 = vpack.c.b16 %v771, %v770
  %v777 = vpack.c.b16 %v773, %v772
  %v779 = vsel %vm680, %v774, 0
  %v782 = vsel %vm680, %v775, 0
  %v785 = vsel %vm680, %v776, 0
  %v788 = vsel %vm680, %v777, 0
  %790 = vmatprep.subr.bf16.mxu0 0
  %791 = vmatpush1.bf16.xpose.msra.mxu0 %v682
  %792 = vmatprep.subr.bf16.mxu0 0
  %793 = vmatpush1.bf16.xpose.msra.mxu0 %v685
  %794 = vmatprep.subr.bf16.mxu0 0
  %795 = vmatpush1.bf16.xpose.msra.mxu0 %v688
  %796 = vmatprep.subr.bf16.mxu0 0
  %797 = vmatpush1.bf16.xpose.msra.mxu0 %v691
  %798 = vmatprep.subr.bf16.mxu0 0
  %799 = vmatpush1.bf16.xpose.msra.mxu0 0
  %800 = vmatprep.subr.bf16.mxu0 0
  %801 = vmatpush1.bf16.xpose.msra.mxu0 0
  %802 = vmatprep.subr.bf16.mxu0 0
  %803 = vmatpush1.bf16.xpose.msra.mxu0 0
  %804 = vmatprep.subr.bf16.mxu0 0
  %805 = vmatpush1.bf16.xpose.msra.mxu0 0
  %806 = vmatprep.subr.bf16.mxu0 0
  %807 = vmatpush1.bf16.xpose.msra.mxu0 0
  %808 = vmatprep.subr.bf16.mxu0 0
  %809 = vmatpush1.bf16.xpose.msra.mxu0 0
  %810 = vmatprep.subr.bf16.mxu0 0
  %811 = vmatpush1.bf16.xpose.msra.mxu0 0
  %812 = vmatprep.subr.bf16.mxu0 0
  %813 = vmatpush1.bf16.xpose.msra.mxu0 0
  %814 = vmatprep.subr.bf16.mxu0 0
  %815 = vmatpush1.bf16.xpose.msra.mxu0 0
  %816 = vmatprep.subr.bf16.mxu0 0
  %817 = vmatpush1.bf16.xpose.msra.mxu0 0
  %818 = vmatprep.subr.bf16.mxu0 0
  %819 = vmatpush1.bf16.xpose.msra.mxu0 0
  %820 = vmatprep.subr.bf16.mxu0 0
  %821 = vmatpush1.bf16.xpose.msra.mxu0 0
  %822 = vmatprep.mubr.bf16.mxu0 0
  %823 = vmatmul.mubr.bf16.gmra.mrb[0].mxu0 %v779
  %v824 = vpop.f32.mrb[0].mxu0
  %v825 = vadd.f32 %v572, %v824
  %v826 = vpop.f32.mrb[0].mxu0
  %v827 = vpop.f32.mrb[0].mxu0
  %v828 = vadd.f32 %v573, %v827
  %v829 = vpop.f32.mrb[0].mxu0
  %830 = vmatprep.mubr.bf16.mxu0 0
  %831 = vmatmul.mubr.bf16.gmra.mrb[0].mxu0 %v782
  %v832 = vpop.f32.mrb[0].mxu0
  %v833 = vadd.f32 %v574, %v832
  %v834 = vpop.f32.mrb[0].mxu0
  %v835 = vpop.f32.mrb[0].mxu0
  %v836 = vadd.f32 %v575, %v835
  %v837 = vpop.f32.mrb[0].mxu0
  %838 = vmatprep.mubr.bf16.mxu0 0
  %839 = vmatmul.mubr.bf16.gmra.mrb[0].mxu0 %v785
  %v840 = vpop.f32.mrb[0].mxu0
  %v841 = vadd.f32 %v576, %v840
  %v842 = vpop.f32.mrb[0].mxu0
  %v843 = vpop.f32.mrb[0].mxu0
  %v844 = vadd.f32 %v577, %v843
  %v845 = vpop.f32.mrb[0].mxu0
  %846 = vmatprep.mubr.bf16.mxu0 0
  %847 = vmatmul.mubr.bf16.gmra.mrb[0].mxu0 %v788
  %v848 = vpop.f32.mrb[0].mxu0
  %v849 = vadd.f32 %v578, %v848
  %v850 = vpop.f32.mrb[0].mxu0
  %v851 = vpop.f32.mrb[0].mxu0
  %v852 = vadd.f32 %v579, %v851
  %v853 = vpop.f32.mrb[0].mxu0
  %854 = vdwg.mxu0
  %vm855 = vcmask 523264
  %v856 = vsel %vm855, %v825, -inf
  %857 = vmax.xlane.f32.xlu0 %v856
  %v858 = vpop.xlane.xlu0 %857
  %v859 = vsel %vm855, %v828, -inf
  %860 = vmax.xlane.f32.xlu0 %v859
  %v861 = vpop.xlane.xlu0 %860
  %v862 = vsel %vm855, %v833, -inf
  %863 = vmax.xlane.f32.xlu0 %v862
  %v864 = vpop.xlane.xlu0 %863
  %v865 = vsel %vm855, %v836, -inf
  %866 = vmax.xlane.f32.xlu0 %v865
  %v867 = vpop.xlane.xlu0 %866
  %v868 = vsel %vm855, %v841, -inf
  %869 = vmax.xlane.f32.xlu0 %v868
  %v870 = vpop.xlane.xlu0 %869
  %v871 = vsel %vm855, %v844, -inf
  %872 = vmax.xlane.f32.xlu0 %v871
  %v873 = vpop.xlane.xlu0 %872
  %v874 = vsel %vm855, %v849, -inf
  %875 = vmax.xlane.f32.xlu0 %v874
  %v876 = vpop.xlane.xlu0 %875
  %v877 = vsel %vm855, %v852, -inf
  %878 = vmax.xlane.f32.xlu0 %v877
  %v879 = vpop.xlane.xlu0 %878
  %v880 = vsub.f32 %v825, %v858
  %v881 = vsub.f32 %v828, %v861
  %v882 = vsub.f32 %v833, %v864
  %v883 = vsub.f32 %v836, %v867
  %v884 = vsub.f32 %v841, %v870
  %v885 = vsub.f32 %v844, %v873
  %v886 = vsub.f32 %v849, %v876
  %v887 = vsub.f32 %v852, %v879
  %v888 = vmul.f32 %v880, 1.442695
  %v889 = vpow.pop %v888
  %v890 = vmul.f32 %v881, 1.442695
  %v891 = vpow.pop %v890
  %v892 = vmul.f32 %v882, 1.442695
  %v893 = vpow.pop %v892
  %v894 = vmul.f32 %v883, 1.442695
  %v895 = vpow.pop %v894
  %v896 = vmul.f32 %v884, 1.442695
  %v897 = vpow.pop %v896
  %v898 = vmul.f32 %v885, 1.442695
  %v899 = vpow.pop %v898
  %v900 = vmul.f32 %v886, 1.442695
  %v901 = vpow.pop %v900
  %v902 = vmul.f32 %v887, 1.442695
  %v903 = vpow.pop %v902
  %v904 = vsel %vm855, %v889, 0.0
  %905 = vadd.xlane.f32.xlu0 %v904
  %v906 = vpop.xlane.xlu0 %905
  %v907 = vsel %vm855, %v891, 0.0
  %908 = vadd.xlane.f32.xlu0 %v907
  %v909 = vpop.xlane.xlu0 %908
  %v910 = vsel %vm855, %v893, 0.0
  %911 = vadd.xlane.f32.xlu0 %v910
  %v912 = vpop.xlane.xlu0 %911
  %v913 = vsel %vm855, %v895, 0.0
  %914 = vadd.xlane.f32.xlu0 %v913
  %v915 = vpop.xlane.xlu0 %914
  %v916 = vsel %vm855, %v897, 0.0
  %917 = vadd.xlane.f32.xlu0 %v916
  %v918 = vpop.xlane.xlu0 %917
  %v919 = vsel %vm855, %v899, 0.0
  %920 = vadd.xlane.f32.xlu0 %v919
  %v921 = vpop.xlane.xlu0 %920
  %v922 = vsel %vm855, %v901, 0.0
  %923 = vadd.xlane.f32.xlu0 %v922
  %v924 = vpop.xlane.xlu0 %923
  %v925 = vsel %vm855, %v903, 0.0
  %926 = vadd.xlane.f32.xlu0 %v925
  %v927 = vpop.xlane.xlu0 %926
  %v928 = vrcp.pop %v906
  %v929 = vrcp.pop %v909
  %v930 = vrcp.pop %v912
  %v931 = vrcp.pop %v915
  %v932 = vrcp.pop %v918
  %v933 = vrcp.pop %v921
  %v934 = vrcp.pop %v924
  %v935 = vrcp.pop %v927
  %v936 = vmul.f32 %v889, %v928
  %v937 = vmul.f32 %v891, %v929
  %v938 = vmul.f32 %v893, %v930
  %v939 = vmul.f32 %v895, %v931
  %v940 = vmul.f32 %v897, %v932
  %v941 = vmul.f32 %v899, %v933
  %v942 = vmul.f32 %v901, %v934
  %v943 = vmul.f32 %v903, %v935
  %v944 = vpack.c.bf16 %v937, %v936
  %v945 = vpack.c.bf16 %v939, %v938
  %v946 = vpack.c.bf16 %v941, %v940
  %v947 = vpack.c.bf16 %v943, %v942
  %v948 = vpack.c.bf16 %v731, %v728
  %v949 = vpack.c.bf16 %v739, %v736
  %v950 = vpack.c.bf16 %v747, %v744
  %v951 = vpack.c.bf16 %v755, %v752
  %v953 = vsel %vm855, %v944, 0
  %v956 = vsel %vm855, %v945, 0
  %v959 = vsel %vm855, %v946, 0
  %v962 = vsel %vm855, %v947, 0
  %964 = vmatprep.subr.bf16.mxu0 0
  %965 = vmatpush1.bf16.msra.mxu0 %v948
  %966 = vmatprep.subr.bf16.mxu0 0
  %967 = vmatpush1.bf16.msra.mxu0 %v949
  %968 = vmatprep.subr.bf16.mxu0 0
  %969 = vmatpush1.bf16.msra.mxu0 %v950
  %970 = vmatprep.subr.bf16.mxu0 0
  %971 = vmatpush1.bf16.msra.mxu0 %v951
  %972 = vmatprep.subr.bf16.mxu0 0
  %973 = vmatpush1.bf16.msra.mxu0 0
  %974 = vmatprep.subr.bf16.mxu0 0
  %975 = vmatpush1.bf16.msra.mxu0 0
  %976 = vmatprep.subr.bf16.mxu0 0
  %977 = vmatpush1.bf16.msra.mxu0 0
  %978 = vmatprep.subr.bf16.mxu0 0
  %979 = vmatpush1.bf16.msra.mxu0 0
  %980 = vmatprep.subr.bf16.mxu0 0
  %981 = vmatpush1.bf16.msra.mxu0 0
  %982 = vmatprep.subr.bf16.mxu0 0
  %983 = vmatpush1.bf16.msra.mxu0 0
  %984 = vmatprep.subr.bf16.mxu0 0
  %985 = vmatpush1.bf16.msra.mxu0 0
  %986 = vmatprep.subr.bf16.mxu0 0
  %987 = vmatpush1.bf16.msra.mxu0 0
  %988 = vmatprep.subr.bf16.mxu0 0
  %989 = vmatpush1.bf16.msra.mxu0 0
  %990 = vmatprep.subr.bf16.mxu0 0
  %991 = vmatpush1.bf16.msra.mxu0 0
  %992 = vmatprep.subr.bf16.mxu0 0
  %993 = vmatpush1.bf16.msra.mxu0 0
  %994 = vmatprep.subr.bf16.mxu0 0
  %995 = vmatpush1.bf16.msra.mxu0 0
  %996 = vmatprep.mubr.bf16.mxu0 0
  %997 = vmatmul.mubr.bf16.gmra.mrb[0].mxu0 %v953
  %v998 = vpop.f32.mrb[0].mxu0
  %v999 = vadd.f32 0.0, %v998
  %v1000 = vpop.f32.mrb[0].mxu0
  %v1001 = vpop.f32.mrb[0].mxu0
  %v1002 = vadd.f32 0.0, %v1001
  %v1003 = vpop.f32.mrb[0].mxu0
  %1004 = vmatprep.mubr.bf16.mxu0 0
  %1005 = vmatmul.mubr.bf16.gmra.mrb[0].mxu0 %v956
  %v1006 = vpop.f32.mrb[0].mxu0
  %v1007 = vadd.f32 0.0, %v1006
  %v1008 = vpop.f32.mrb[0].mxu0
  %v1009 = vpop.f32.mrb[0].mxu0
  %v1010 = vadd.f32 0.0, %v1009
  %v1011 = vpop.f32.mrb[0].mxu0
  %1012 = vmatprep.mubr.bf16.mxu0 0
  %1013 = vmatmul.mubr.bf16.gmra.mrb[0].mxu0 %v959
  %v1014 = vpop.f32.mrb[0].mxu0
  %v1015 = vadd.f32 0.0, %v1014
  %v1016 = vpop.f32.mrb[0].mxu0
  %v1017 = vpop.f32.mrb[0].mxu0
  %v1018 = vadd.f32 0.0, %v1017
  %v1019 = vpop.f32.mrb[0].mxu0
  %1020 = vmatprep.mubr.bf16.mxu0 0
  %1021 = vmatmul.mubr.bf16.gmra.mrb[0].mxu0 %v962
  %v1022 = vpop.f32.mrb[0].mxu0
  %v1023 = vadd.f32 0.0, %v1022
  %v1024 = vpop.f32.mrb[0].mxu0
  %v1025 = vpop.f32.mrb[0].mxu0
  %v1026 = vadd.f32 0.0, %v1025
  %v1027 = vpop.f32.mrb[0].mxu0
  %1028 = vdwg.mxu0
  %v1029 = vmul.f32 %v999, %v607
  %v1030 = vmul.f32 %v1002, %v608
  %v1031 = vmul.f32 %v1007, %v609
  %v1032 = vmul.f32 %v1010, %v610
  %v1033 = vmul.f32 %v1015, %v611
  %v1034 = vmul.f32 %v1018, %v612
  %v1035 = vmul.f32 %v1023, %v613
  %v1036 = vmul.f32 %v1026, %v614
  %v1037 = vadd.f32 %v1029, %v1031
  %v1038 = vadd.f32 %v1030, %v1032
  %v1039 = vadd.f32 %v1037, %v1033
  %v1040 = vadd.f32 %v1038, %v1034
  %v1041 = vadd.f32 %v1039, %v1035
  %v1042 = vadd.f32 %v1040, %v1036
  %v1043 = vpack.c.bf16 %v1042, %v1041
  %v1044 = vlaneseq
  %v1045 = vshrl.u32 %v1044, 7
  %v1046 = vsub.s32 0, %v1045
  %v1047 = vrot.slane %v588, %v1046
  %v1052 = vunpack.c.l.b16 %v619
  %v1053 = vunpack.c.l.b16 %v620
  %v1054 = vunpack.c.l.b16 %v621
  %v1055 = vunpack.c.l.b16 %v622
  %v1056 = vpack.c.b16 %v1053, %v1052
  %v1057 = vpack.c.b16 %v1055, %v1054
  %v1061 = vsel %vm680, %v1043, 0
  %1063 = vmatprep.subr.bf16.mxu0 0
  %1064 = vmatpush1.bf16.msra.mxu0 %v1056
  %1065 = vmatprep.subr.bf16.mxu0 0
  %1066 = vmatpush1.bf16.msra.mxu0 %v1057
  %1067 = vmatprep.subr.bf16.mxu0 0
  %1068 = vmatpush1.bf16.msra.mxu0 0
  %1069 = vmatprep.subr.bf16.mxu0 0
  %1070 = vmatpush1.bf16.msra.mxu0 0
  %1071 = vmatprep.subr.bf16.mxu0 0
  %1072 = vmatpush1.bf16.msra.mxu0 0
  %1073 = vmatprep.subr.bf16.mxu0 0
  %1074 = vmatpush1.bf16.msra.mxu0 0
  %1075 = vmatprep.subr.bf16.mxu0 0
  %1076 = vmatpush1.bf16.msra.mxu0 0
  %1077 = vmatprep.subr.bf16.mxu0 0
  %1078 = vmatpush1.bf16.msra.mxu0 0
  %1079 = vmatprep.subr.bf16.mxu0 0
  %1080 = vmatpush1.bf16.msra.mxu0 0
  %1081 = vmatprep.subr.bf16.mxu0 0
  %1082 = vmatpush1.bf16.msra.mxu0 0
  %1083 = vmatprep.subr.bf16.mxu0 0
  %1084 = vmatpush1.bf16.msra.mxu0 0
  %1085 = vmatprep.subr.bf16.mxu0 0
  %1086 = vmatpush1.bf16.msra.mxu0 0
  %1087 = vmatprep.subr.bf16.mxu0 0
  %1088 = vmatpush1.bf16.msra.mxu0 0
  %1089 = vmatprep.subr.bf16.mxu0 0
  %1090 = vmatpush1.bf16.msra.mxu0 0
  %1091 = vmatprep.subr.bf16.mxu0 0
  %1092 = vmatpush1.bf16.msra.mxu0 0
  %1093 = vmatprep.subr.bf16.mxu0 0
  %1094 = vmatpush1.bf16.msra.mxu0 0
  %1095 = vmatprep.mubr.bf16.mxu0 0
  %1096 = vmatmul.mubr.bf16.gmra.mrb[0].mxu0 %v1061
  %v1097 = vpop.f32.mrb[0].mxu0
  %v1098 = vadd.f32 %v1047, %v1097
  %v1099 = vpop.f32.mrb[0].mxu0
  %v1100 = vpop.f32.mrb[0].mxu0
  %v1101 = vadd.f32 %v1047, %v1100
  %v1102 = vpop.f32.mrb[0].mxu0
  %1103 = vdwg.mxu0
  %v1104 = vmax.f32 %v1098, 0.0
  %v1105 = vmax.f32 %v1101, 0.0
  %v1106 = vlaneseq
  %v1107 = vshrl.u32 %v1106, 7
  %v1108 = vsub.s32 0, %v1107
  %v1109 = vrot.slane %v589, %v1108
  %v1114 = vunpack.c.l.b16 %v623
  %v1115 = vunpack.c.l.b16 %v624
  %v1116 = vunpack.c.l.b16 %v625
  %v1117 = vunpack.c.l.b16 %v626
  %v1118 = vpack.c.b16 %v1115, %v1114
  %v1119 = vpack.c.b16 %v1117, %v1116
  %1122 = vmatprep.subr.bf16.mxu0 0
  %1123 = vmatpush1.bf16.msra.mxu0 %v1118
  %1124 = vmatprep.subr.bf16.mxu0 0
  %1125 = vmatpush1.bf16.msra.mxu0 %v1119
  %1126 = vmatprep.subr.bf16.mxu0 0
  %1127 = vmatpush1.bf16.msra.mxu0 0
  %1128 = vmatprep.subr.bf16.mxu0 0
  %1129 = vmatpush1.bf16.msra.mxu0 0
  %1130 = vmatprep.subr.bf16.mxu0 0
  %1131 = vmatpush1.bf16.msra.mxu0 0
  %1132 = vmatprep.subr.bf16.mxu0 0
  %1133 = vmatpush1.bf16.msra.mxu0 0
  %1134 = vmatprep.subr.bf16.mxu0 0
  %1135 = vmatpush1.bf16.msra.mxu0 0
  %1136 = vmatprep.subr.bf16.mxu0 0
  %1137 = vmatpush1.bf16.msra.mxu0 0
  %1138 = vmatprep.subr.bf16.mxu0 0
  %1139 = vmatpush1.bf16.msra.mxu0 0
  %1140 = vmatprep.subr.bf16.mxu0 0
  %1141 = vmatpush1.bf16.msra.mxu0 0
  %1142 = vmatprep.subr.bf16.mxu0 0
  %1143 = vmatpush1.bf16.msra.mxu0 0
  %1144 = vmatprep.subr.bf16.mxu0 0
  %1145 = vmatpush1.bf16.msra.mxu0 0
  %1146 = vmatprep.subr.bf16.mxu0 0
  %1147 = vmatpush1.bf16.msra.mxu0 0
  %1148 = vmatprep.subr.bf16.mxu0 0
  %1149 = vmatpush1.bf16.msra.mxu0 0
  %1150 = vmatprep.subr.bf16.mxu0 0
  %1151 = vmatpush1.bf16.msra.mxu0 0
  %1152 = vmatprep.subr.bf16.mxu0 0
  %1153 = vmatpush1.bf16.msra.mxu0 0
  %1154 = vmatprep.mubr.bf16.mxu0 0
  %1155 = vmatmul.mubr.bf16.gmra.mrb[0].mxu0 %v1061
  %v1156 = vpop.f32.mrb[0].mxu0
  %v1157 = vadd.f32 %v1109, %v1156
  %v1158 = vpop.f32.mrb[0].mxu0
  %v1159 = vpop.f32.mrb[0].mxu0
  %v1160 = vadd.f32 %v1109, %v1159
  %v1161 = vpop.f32.mrb[0].mxu0
  %1162 = vdwg.mxu0
  %v1163 = vpack.c.bf16 %v1105, %v1104
  %v1164 = vlaneseq
  %v1165 = vshrl.u32 %v1164, 7
  %v1166 = vsub.s32 0, %v1165
  %v1167 = vrot.slane %v590, %v1166
  %v1184 = vunpack.c.l.b16 %v627
  %v1185 = vunpack.c.l.b16 %v628
  %v1186 = vunpack.c.l.b16 %v629
  %v1187 = vunpack.c.l.b16 %v630
  %v1188 = vunpack.c.l.b16 %v631
  %v1189 = vunpack.c.l.b16 %v632
  %v1190 = vunpack.c.l.b16 %v633
  %v1191 = vunpack.c.l.b16 %v634
  %v1192 = vunpack.c.l.b16 %v635
  %v1193 = vunpack.c.l.b16 %v636
  %v1194 = vunpack.c.l.b16 %v637
  %v1195 = vunpack.c.l.b16 %v638
  %v1196 = vunpack.c.l.b16 %v639
  %v1197 = vunpack.c.l.b16 %v640
  %v1198 = vunpack.c.l.b16 %v641
  %v1199 = vunpack.c.l.b16 %v642
  %v1200 = vpack.c.b16 %v1185, %v1184
  %v1201 = vpack.c.b16 %v1187, %v1186
  %v1202 = vpack.c.b16 %v1189, %v1188
  %v1203 = vpack.c.b16 %v1191, %v1190
  %v1204 = vpack.c.b16 %v1193, %v1192
  %v1205 = vpack.c.b16 %v1195, %v1194
  %v1206 = vpack.c.b16 %v1197, %v1196
  %v1207 = vpack.c.b16 %v1199, %v1198
  %1216 = vmatprep.subr.bf16.mxu0 0
  %1217 = vmatpush1.bf16.msra.mxu0 %v1200
  %1218 = vmatprep.subr.bf16.mxu0 0
  %1219 = vmatpush1.bf16.msra.mxu0 %v1201
  %1220 = vmatprep.subr.bf16.mxu0 0
  %1221 = vmatpush1.bf16.msra.mxu0 %v1202
  %1222 = vmatprep.subr.bf16.mxu0 0
  %1223 = vmatpush1.bf16.msra.mxu0 %v1203
  %1224 = vmatprep.subr.bf16.mxu0 0
  %1225 = vmatpush1.bf16.msra.mxu0 %v1204
  %1226 = vmatprep.subr.bf16.mxu0 0
  %1227 = vmatpush1.bf16.msra.mxu0 %v1205
  %1228 = vmatprep.subr.bf16.mxu0 0
  %1229 = vmatpush1.bf16.msra.mxu0 %v1206
  %1230 = vmatprep.subr.bf16.mxu0 0
  %1231 = vmatpush1.bf16.msra.mxu0 %v1207
  %1232 = vmatprep.subr.bf16.mxu0 0
  %1233 = vmatpush1.bf16.msra.mxu0 0
  %1234 = vmatprep.subr.bf16.mxu0 0
  %1235 = vmatpush1.bf16.msra.mxu0 0
  %1236 = vmatprep.subr.bf16.mxu0 0
  %1237 = vmatpush1.bf16.msra.mxu0 0
  %1238 = vmatprep.subr.bf16.mxu0 0
  %1239 = vmatpush1.bf16.msra.mxu0 0
  %1240 = vmatprep.subr.bf16.mxu0 0
  %1241 = vmatpush1.bf16.msra.mxu0 0
  %1242 = vmatprep.subr.bf16.mxu0 0
  %1243 = vmatpush1.bf16.msra.mxu0 0
  %1244 = vmatprep.subr.bf16.mxu0 0
  %1245 = vmatpush1.bf16.msra.mxu0 0
  %1246 = vmatprep.subr.bf16.mxu0 0
  %1247 = vmatpush1.bf16.msra.mxu0 0
  %1248 = vmatprep.mubr.bf16.mxu0 0
  %1249 = vmatmul.mubr.bf16.gmra.mrb[0].mxu0 %v1163
  %v1250 = vpop.f32.mrb[0].mxu0
  %v1251 = vadd.f32 %v1167, %v1250
  %v1252 = vpop.f32.mrb[0].mxu0
  %v1253 = vpop.f32.mrb[0].mxu0
  %v1254 = vadd.f32 %v1167, %v1253
  %v1255 = vpop.f32.mrb[0].mxu0
  %1256 = vdwg.mxu0
  %v1257 = vxor.u32 %v1251, 2147483648
  %v1258 = vxor.u32 %v1254, 2147483648
  %v1259 = vmul.f32 %v1257, 1.442695
  %v1260 = vpow.pop %v1259
  %v1261 = vmul.f32 %v1258, 1.442695
  %v1262 = vpow.pop %v1261
  %v1263 = vadd.f32 %v1260, 1.0
  %v1264 = vadd.f32 %v1262, 1.0
  %v1265 = vrcp.pop %v1263
  %v1266 = vmul.f32 1.0, %v1265
  %v1267 = vrcp.pop %v1264
  %v1268 = vmul.f32 1.0, %v1267
  %v1269 = vsel %vm647, %v1266, %v1157
  %v1270 = vsel %vm647, %v1268, %v1160
  %1271 = vst [vmem:[%s4] sm:$0xff] %v1269
  %1272 = vst [vmem:[%s4 + $0x8] sm:$0xff] %v1270
  %v1273 = vadd.f32 %v534, %v564
  %v1274 = vadd.f32 %v537, %v565
  %v1275 = vadd.f32 %v542, %v566
  %v1276 = vadd.f32 %v545, %v567
  %v1277 = vadd.f32 %v550, %v568
  %v1278 = vadd.f32 %v553, %v569
  %v1279 = vadd.f32 %v558, %v570
  %v1280 = vadd.f32 %v561, %v571
  %v1281 = vmax.f32 %v1273, 0.0
  %v1282 = vmax.f32 %v1274, 0.0
  %v1283 = vmax.f32 %v1275, 0.0
  %v1284 = vmax.f32 %v1276, 0.0
  %v1285 = vmax.f32 %v1277, 0.0
  %v1286 = vmax.f32 %v1278, 0.0
  %v1287 = vmax.f32 %v1279, 0.0
  %v1288 = vmax.f32 %v1280, 0.0
  %v1289 = vpack.c.bf16 %v1282, %v1281
  %v1290 = vpack.c.bf16 %v1284, %v1283
  %v1291 = vpack.c.bf16 %v1286, %v1285
  %v1292 = vpack.c.bf16 %v1288, %v1287
  %v1294 = vsel %vm680, %v1289, 0
  %v1297 = vsel %vm680, %v1290, 0
  %v1300 = vsel %vm680, %v1291, 0
  %v1303 = vsel %vm680, %v1292, 0
  %1305 = vmatprep.subr.bf16.mxu0 0
  %1306 = vmatpush1.bf16.msra.mxu0 %v676
  %1307 = vmatprep.subr.bf16.mxu0 0
  %1308 = vmatpush1.bf16.msra.mxu0 %v677
  %1309 = vmatprep.subr.bf16.mxu0 0
  %1310 = vmatpush1.bf16.msra.mxu0 0
  %1311 = vmatprep.subr.bf16.mxu0 0
  %1312 = vmatpush1.bf16.msra.mxu0 0
  %1313 = vmatprep.subr.bf16.mxu0 0
  %1314 = vmatpush1.bf16.msra.mxu0 0
  %1315 = vmatprep.subr.bf16.mxu0 0
  %1316 = vmatpush1.bf16.msra.mxu0 0
  %1317 = vmatprep.subr.bf16.mxu0 0
  %1318 = vmatpush1.bf16.msra.mxu0 0
  %1319 = vmatprep.subr.bf16.mxu0 0
  %1320 = vmatpush1.bf16.msra.mxu0 0
  %1321 = vmatprep.subr.bf16.mxu0 0
  %1322 = vmatpush1.bf16.msra.mxu0 0
  %1323 = vmatprep.subr.bf16.mxu0 0
  %1324 = vmatpush1.bf16.msra.mxu0 0
  %1325 = vmatprep.subr.bf16.mxu0 0
  %1326 = vmatpush1.bf16.msra.mxu0 0
  %1327 = vmatprep.subr.bf16.mxu0 0
  %1328 = vmatpush1.bf16.msra.mxu0 0
  %1329 = vmatprep.subr.bf16.mxu0 0
  %1330 = vmatpush1.bf16.msra.mxu0 0
  %1331 = vmatprep.subr.bf16.mxu0 0
  %1332 = vmatpush1.bf16.msra.mxu0 0
  %1333 = vmatprep.subr.bf16.mxu0 0
  %1334 = vmatpush1.bf16.msra.mxu0 0
  %1335 = vmatprep.subr.bf16.mxu0 0
  %1336 = vmatpush1.bf16.msra.mxu0 0
  %1337 = vmatprep.mubr.bf16.mxu0 0
  %1338 = vmatmul.mubr.bf16.gmra.mrb[0].mxu0 %v1294
  %v1339 = vpop.f32.mrb[0].mxu0
  %v1340 = vadd.f32 %v580, %v1339
  %v1341 = vpop.f32.mrb[0].mxu0
  %v1342 = vpop.f32.mrb[0].mxu0
  %v1343 = vadd.f32 %v581, %v1342
  %v1344 = vpop.f32.mrb[0].mxu0
  %1345 = vmatprep.mubr.bf16.mxu0 0
  %1346 = vmatmul.mubr.bf16.gmra.mrb[0].mxu0 %v1297
  %v1347 = vpop.f32.mrb[0].mxu0
  %v1348 = vadd.f32 %v582, %v1347
  %v1349 = vpop.f32.mrb[0].mxu0
  %v1350 = vpop.f32.mrb[0].mxu0
  %v1351 = vadd.f32 %v583, %v1350
  %v1352 = vpop.f32.mrb[0].mxu0
  %1353 = vmatprep.mubr.bf16.mxu0 0
  %1354 = vmatmul.mubr.bf16.gmra.mrb[0].mxu0 %v1300
  %v1355 = vpop.f32.mrb[0].mxu0
  %v1356 = vadd.f32 %v584, %v1355
  %v1357 = vpop.f32.mrb[0].mxu0
  %v1358 = vpop.f32.mrb[0].mxu0
  %v1359 = vadd.f32 %v585, %v1358
  %v1360 = vpop.f32.mrb[0].mxu0
  %1361 = vmatprep.mubr.bf16.mxu0 0
  %1362 = vmatmul.mubr.bf16.gmra.mrb[0].mxu0 %v1303
  %v1363 = vpop.f32.mrb[0].mxu0
  %v1364 = vadd.f32 %v586, %v1363
  %v1365 = vpop.f32.mrb[0].mxu0
  %v1366 = vpop.f32.mrb[0].mxu0
  %v1367 = vadd.f32 %v587, %v1366
  %v1368 = vpop.f32.mrb[0].mxu0
  %1369 = vdwg.mxu0
  %1370 = vmatprep.subr.bf16.mxu0 0
  %1371 = vmatpush1.bf16.xpose.msra.mxu0 %v1294
  %1372 = vmatprep.subr.bf16.mxu0 0
  %1373 = vmatpush1.bf16.xpose.msra.mxu0 %v1297
  %1374 = vmatprep.subr.bf16.mxu0 0
  %1375 = vmatpush1.bf16.xpose.msra.mxu0 %v1300
  %1376 = vmatprep.subr.bf16.mxu0 0
  %1377 = vmatpush1.bf16.xpose.msra.mxu0 %v1303
  %1378 = vmatprep.subr.bf16.mxu0 0
  %1379 = vmatpush1.bf16.xpose.msra.mxu0 0
  %1380 = vmatprep.subr.bf16.mxu0 0
  %1381 = vmatpush1.bf16.xpose.msra.mxu0 0
  %1382 = vmatprep.subr.bf16.mxu0 0
  %1383 = vmatpush1.bf16.xpose.msra.mxu0 0
  %1384 = vmatprep.subr.bf16.mxu0 0
  %1385 = vmatpush1.bf16.xpose.msra.mxu0 0
  %1386 = vmatprep.subr.bf16.mxu0 0
  %1387 = vmatpush1.bf16.xpose.msra.mxu0 0
  %1388 = vmatprep.subr.bf16.mxu0 0
  %1389 = vmatpush1.bf16.xpose.msra.mxu0 0
  %1390 = vmatprep.subr.bf16.mxu0 0
  %1391 = vmatpush1.bf16.xpose.msra.mxu0 0
  %1392 = vmatprep.subr.bf16.mxu0 0
  %1393 = vmatpush1.bf16.xpose.msra.mxu0 0
  %1394 = vmatprep.subr.bf16.mxu0 0
  %1395 = vmatpush1.bf16.xpose.msra.mxu0 0
  %1396 = vmatprep.subr.bf16.mxu0 0
  %1397 = vmatpush1.bf16.xpose.msra.mxu0 0
  %1398 = vmatprep.subr.bf16.mxu0 0
  %1399 = vmatpush1.bf16.xpose.msra.mxu0 0
  %1400 = vmatprep.subr.bf16.mxu0 0
  %1401 = vmatpush1.bf16.xpose.msra.mxu0 0
  %1402 = vmatprep.mubr.bf16.mxu0 0
  %1403 = vmatmul.mubr.bf16.gmra.mrb[0].mxu0 %v779
  %v1404 = vpop.f32.mrb[0].mxu0
  %v1405 = vadd.f32 %v572, %v1404
  %v1406 = vpop.f32.mrb[0].mxu0
  %v1407 = vpop.f32.mrb[0].mxu0
  %v1408 = vadd.f32 %v573, %v1407
  %v1409 = vpop.f32.mrb[0].mxu0
  %1410 = vmatprep.mubr.bf16.mxu0 0
  %1411 = vmatmul.mubr.bf16.gmra.mrb[0].mxu0 %v782
  %v1412 = vpop.f32.mrb[0].mxu0
  %v1413 = vadd.f32 %v574, %v1412
  %v1414 = vpop.f32.mrb[0].mxu0
  %v1415 = vpop.f32.mrb[0].mxu0
  %v1416 = vadd.f32 %v575, %v1415
  %v1417 = vpop.f32.mrb[0].mxu0
  %1418 = vmatprep.mubr.bf16.mxu0 0
  %1419 = vmatmul.mubr.bf16.gmra.mrb[0].mxu0 %v785
  %v1420 = vpop.f32.mrb[0].mxu0
  %v1421 = vadd.f32 %v576, %v1420
  %v1422 = vpop.f32.mrb[0].mxu0
  %v1423 = vpop.f32.mrb[0].mxu0
  %v1424 = vadd.f32 %v577, %v1423
  %v1425 = vpop.f32.mrb[0].mxu0
  %1426 = vmatprep.mubr.bf16.mxu0 0
  %1427 = vmatmul.mubr.bf16.gmra.mrb[0].mxu0 %v788
  %v1428 = vpop.f32.mrb[0].mxu0
  %v1429 = vadd.f32 %v578, %v1428
  %v1430 = vpop.f32.mrb[0].mxu0
  %v1431 = vpop.f32.mrb[0].mxu0
  %v1432 = vadd.f32 %v579, %v1431
  %v1433 = vpop.f32.mrb[0].mxu0
  %1434 = vdwg.mxu0
  %v1435 = vsel %vm855, %v1405, -inf
  %1436 = vmax.xlane.f32.xlu0 %v1435
  %v1437 = vpop.xlane.xlu0 %1436
  %v1438 = vsel %vm855, %v1408, -inf
  %1439 = vmax.xlane.f32.xlu0 %v1438
  %v1440 = vpop.xlane.xlu0 %1439
  %v1441 = vsel %vm855, %v1413, -inf
  %1442 = vmax.xlane.f32.xlu0 %v1441
  %v1443 = vpop.xlane.xlu0 %1442
  %v1444 = vsel %vm855, %v1416, -inf
  %1445 = vmax.xlane.f32.xlu0 %v1444
  %v1446 = vpop.xlane.xlu0 %1445
  %v1447 = vsel %vm855, %v1421, -inf
  %1448 = vmax.xlane.f32.xlu0 %v1447
  %v1449 = vpop.xlane.xlu0 %1448
  %v1450 = vsel %vm855, %v1424, -inf
  %1451 = vmax.xlane.f32.xlu0 %v1450
  %v1452 = vpop.xlane.xlu0 %1451
  %v1453 = vsel %vm855, %v1429, -inf
  %1454 = vmax.xlane.f32.xlu0 %v1453
  %v1455 = vpop.xlane.xlu0 %1454
  %v1456 = vsel %vm855, %v1432, -inf
  %1457 = vmax.xlane.f32.xlu0 %v1456
  %v1458 = vpop.xlane.xlu0 %1457
  %v1459 = vsub.f32 %v1405, %v1437
  %v1460 = vsub.f32 %v1408, %v1440
  %v1461 = vsub.f32 %v1413, %v1443
  %v1462 = vsub.f32 %v1416, %v1446
  %v1463 = vsub.f32 %v1421, %v1449
  %v1464 = vsub.f32 %v1424, %v1452
  %v1465 = vsub.f32 %v1429, %v1455
  %v1466 = vsub.f32 %v1432, %v1458
  %v1467 = vmul.f32 %v1459, 1.442695
  %v1468 = vpow.pop %v1467
  %v1469 = vmul.f32 %v1460, 1.442695
  %v1470 = vpow.pop %v1469
  %v1471 = vmul.f32 %v1461, 1.442695
  %v1472 = vpow.pop %v1471
  %v1473 = vmul.f32 %v1462, 1.442695
  %v1474 = vpow.pop %v1473
  %v1475 = vmul.f32 %v1463, 1.442695
  %v1476 = vpow.pop %v1475
  %v1477 = vmul.f32 %v1464, 1.442695
  %v1478 = vpow.pop %v1477
  %v1479 = vmul.f32 %v1465, 1.442695
  %v1480 = vpow.pop %v1479
  %v1481 = vmul.f32 %v1466, 1.442695
  %v1482 = vpow.pop %v1481
  %v1483 = vsel %vm855, %v1468, 0.0
  %1484 = vadd.xlane.f32.xlu0 %v1483
  %v1485 = vpop.xlane.xlu0 %1484
  %v1486 = vsel %vm855, %v1470, 0.0
  %1487 = vadd.xlane.f32.xlu0 %v1486
  %v1488 = vpop.xlane.xlu0 %1487
  %v1489 = vsel %vm855, %v1472, 0.0
  %1490 = vadd.xlane.f32.xlu0 %v1489
  %v1491 = vpop.xlane.xlu0 %1490
  %v1492 = vsel %vm855, %v1474, 0.0
  %1493 = vadd.xlane.f32.xlu0 %v1492
  %v1494 = vpop.xlane.xlu0 %1493
  %v1495 = vsel %vm855, %v1476, 0.0
  %1496 = vadd.xlane.f32.xlu0 %v1495
  %v1497 = vpop.xlane.xlu0 %1496
  %v1498 = vsel %vm855, %v1478, 0.0
  %1499 = vadd.xlane.f32.xlu0 %v1498
  %v1500 = vpop.xlane.xlu0 %1499
  %v1501 = vsel %vm855, %v1480, 0.0
  %1502 = vadd.xlane.f32.xlu0 %v1501
  %v1503 = vpop.xlane.xlu0 %1502
  %v1504 = vsel %vm855, %v1482, 0.0
  %1505 = vadd.xlane.f32.xlu0 %v1504
  %v1506 = vpop.xlane.xlu0 %1505
  %v1507 = vrcp.pop %v1485
  %v1508 = vrcp.pop %v1488
  %v1509 = vrcp.pop %v1491
  %v1510 = vrcp.pop %v1494
  %v1511 = vrcp.pop %v1497
  %v1512 = vrcp.pop %v1500
  %v1513 = vrcp.pop %v1503
  %v1514 = vrcp.pop %v1506
  %v1515 = vmul.f32 %v1468, %v1507
  %v1516 = vmul.f32 %v1470, %v1508
  %v1517 = vmul.f32 %v1472, %v1509
  %v1518 = vmul.f32 %v1474, %v1510
  %v1519 = vmul.f32 %v1476, %v1511
  %v1520 = vmul.f32 %v1478, %v1512
  %v1521 = vmul.f32 %v1480, %v1513
  %v1522 = vmul.f32 %v1482, %v1514
  %v1523 = vpack.c.bf16 %v1516, %v1515
  %v1524 = vpack.c.bf16 %v1518, %v1517
  %v1525 = vpack.c.bf16 %v1520, %v1519
  %v1526 = vpack.c.bf16 %v1522, %v1521
  %v1527 = vpack.c.bf16 %v1343, %v1340
  %v1528 = vpack.c.bf16 %v1351, %v1348
  %v1529 = vpack.c.bf16 %v1359, %v1356
  %v1530 = vpack.c.bf16 %v1367, %v1364
  %v1532 = vsel %vm855, %v1523, 0
  %v1535 = vsel %vm855, %v1524, 0
  %v1538 = vsel %vm855, %v1525, 0
  %v1541 = vsel %vm855, %v1526, 0
  %1543 = vmatprep.subr.bf16.mxu0 0
  %1544 = vmatpush1.bf16.msra.mxu0 %v1527
  %1545 = vmatprep.subr.bf16.mxu0 0
  %1546 = vmatpush1.bf16.msra.mxu0 %v1528
  %1547 = vmatprep.subr.bf16.mxu0 0
  %1548 = vmatpush1.bf16.msra.mxu0 %v1529
  %1549 = vmatprep.subr.bf16.mxu0 0
  %1550 = vmatpush1.bf16.msra.mxu0 %v1530
  %1551 = vmatprep.subr.bf16.mxu0 0
  %1552 = vmatpush1.bf16.msra.mxu0 0
  %1553 = vmatprep.subr.bf16.mxu0 0
  %1554 = vmatpush1.bf16.msra.mxu0 0
  %1555 = vmatprep.subr.bf16.mxu0 0
  %1556 = vmatpush1.bf16.msra.mxu0 0
  %1557 = vmatprep.subr.bf16.mxu0 0
  %1558 = vmatpush1.bf16.msra.mxu0 0
  %1559 = vmatprep.subr.bf16.mxu0 0
  %1560 = vmatpush1.bf16.msra.mxu0 0
  %1561 = vmatprep.subr.bf16.mxu0 0
  %1562 = vmatpush1.bf16.msra.mxu0 0
  %1563 = vmatprep.subr.bf16.mxu0 0
  %1564 = vmatpush1.bf16.msra.mxu0 0
  %1565 = vmatprep.subr.bf16.mxu0 0
  %1566 = vmatpush1.bf16.msra.mxu0 0
  %1567 = vmatprep.subr.bf16.mxu0 0
  %1568 = vmatpush1.bf16.msra.mxu0 0
  %1569 = vmatprep.subr.bf16.mxu0 0
  %1570 = vmatpush1.bf16.msra.mxu0 0
  %1571 = vmatprep.subr.bf16.mxu0 0
  %1572 = vmatpush1.bf16.msra.mxu0 0
  %1573 = vmatprep.subr.bf16.mxu0 0
  %1574 = vmatpush1.bf16.msra.mxu0 0
  %1575 = vmatprep.mubr.bf16.mxu0 0
  %1576 = vmatmul.mubr.bf16.gmra.mrb[0].mxu0 %v1532
  %v1577 = vpop.f32.mrb[0].mxu0
  %v1578 = vadd.f32 0.0, %v1577
  %v1579 = vpop.f32.mrb[0].mxu0
  %v1580 = vpop.f32.mrb[0].mxu0
  %v1581 = vadd.f32 0.0, %v1580
  %v1582 = vpop.f32.mrb[0].mxu0
  %1583 = vmatprep.mubr.bf16.mxu0 0
  %1584 = vmatmul.mubr.bf16.gmra.mrb[0].mxu0 %v1535
  %v1585 = vpop.f32.mrb[0].mxu0
  %v1586 = vadd.f32 0.0, %v1585
  %v1587 = vpop.f32.mrb[0].mxu0
  %v1588 = vpop.f32.mrb[0].mxu0
  %v1589 = vadd.f32 0.0, %v1588
  %v1590 = vpop.f32.mrb[0].mxu0
  %1591 = vmatprep.mubr.bf16.mxu0 0
  %1592 = vmatmul.mubr.bf16.gmra.mrb[0].mxu0 %v1538
  %v1593 = vpop.f32.mrb[0].mxu0
  %v1594 = vadd.f32 0.0, %v1593
  %v1595 = vpop.f32.mrb[0].mxu0
  %v1596 = vpop.f32.mrb[0].mxu0
  %v1597 = vadd.f32 0.0, %v1596
  %v1598 = vpop.f32.mrb[0].mxu0
  %1599 = vmatprep.mubr.bf16.mxu0 0
  %1600 = vmatmul.mubr.bf16.gmra.mrb[0].mxu0 %v1541
  %v1601 = vpop.f32.mrb[0].mxu0
  %v1602 = vadd.f32 0.0, %v1601
  %v1603 = vpop.f32.mrb[0].mxu0
  %v1604 = vpop.f32.mrb[0].mxu0
  %v1605 = vadd.f32 0.0, %v1604
  %v1606 = vpop.f32.mrb[0].mxu0
  %1607 = vdwg.mxu0
  %v1608 = vmul.f32 %v1578, %v607
  %v1609 = vmul.f32 %v1581, %v608
  %v1610 = vmul.f32 %v1586, %v609
  %v1611 = vmul.f32 %v1589, %v610
  %v1612 = vmul.f32 %v1594, %v611
  %v1613 = vmul.f32 %v1597, %v612
  %v1614 = vmul.f32 %v1602, %v613
  %v1615 = vmul.f32 %v1605, %v614
  %v1616 = vadd.f32 %v1608, %v1610
  %v1617 = vadd.f32 %v1609, %v1611
  %v1618 = vadd.f32 %v1616, %v1612
  %v1619 = vadd.f32 %v1617, %v1613
  %v1620 = vadd.f32 %v1618, %v1614
  %v1621 = vadd.f32 %v1619, %v1615
  %v1622 = vpack.c.bf16 %v1621, %v1620
  %v1624 = vsel %vm680, %v1622, 0
  %1626 = vmatprep.subr.bf16.mxu0 0
  %1627 = vmatpush1.bf16.msra.mxu0 %v1056
  %1628 = vmatprep.subr.bf16.mxu0 0
  %1629 = vmatpush1.bf16.msra.mxu0 %v1057
  %1630 = vmatprep.subr.bf16.mxu0 0
  %1631 = vmatpush1.bf16.msra.mxu0 0
  %1632 = vmatprep.subr.bf16.mxu0 0
  %1633 = vmatpush1.bf16.msra.mxu0 0
  %1634 = vmatprep.subr.bf16.mxu0 0
  %1635 = vmatpush1.bf16.msra.mxu0 0
  %1636 = vmatprep.subr.bf16.mxu0 0
  %1637 = vmatpush1.bf16.msra.mxu0 0
  %1638 = vmatprep.subr.bf16.mxu0 0
  %1639 = vmatpush1.bf16.msra.mxu0 0
  %1640 = vmatprep.subr.bf16.mxu0 0
  %1641 = vmatpush1.bf16.msra.mxu0 0
  %1642 = vmatprep.subr.bf16.mxu0 0
  %1643 = vmatpush1.bf16.msra.mxu0 0
  %1644 = vmatprep.subr.bf16.mxu0 0
  %1645 = vmatpush1.bf16.msra.mxu0 0
  %1646 = vmatprep.subr.bf16.mxu0 0
  %1647 = vmatpush1.bf16.msra.mxu0 0
  %1648 = vmatprep.subr.bf16.mxu0 0
  %1649 = vmatpush1.bf16.msra.mxu0 0
  %1650 = vmatprep.subr.bf16.mxu0 0
  %1651 = vmatpush1.bf16.msra.mxu0 0
  %1652 = vmatprep.subr.bf16.mxu0 0
  %1653 = vmatpush1.bf16.msra.mxu0 0
  %1654 = vmatprep.subr.bf16.mxu0 0
  %1655 = vmatpush1.bf16.msra.mxu0 0
  %1656 = vmatprep.subr.bf16.mxu0 0
  %1657 = vmatpush1.bf16.msra.mxu0 0
  %1658 = vmatprep.mubr.bf16.mxu0 0
  %1659 = vmatmul.mubr.bf16.gmra.mrb[0].mxu0 %v1624
  %v1660 = vpop.f32.mrb[0].mxu0
  %v1661 = vadd.f32 %v1047, %v1660
  %v1662 = vpop.f32.mrb[0].mxu0
  %v1663 = vpop.f32.mrb[0].mxu0
  %v1664 = vadd.f32 %v1047, %v1663
  %v1665 = vpop.f32.mrb[0].mxu0
  %1666 = vdwg.mxu0
  %v1667 = vmax.f32 %v1661, 0.0
  %v1668 = vmax.f32 %v1664, 0.0
  %1669 = vmatprep.subr.bf16.mxu0 0
  %1670 = vmatpush1.bf16.msra.mxu0 %v1118
  %1671 = vmatprep.subr.bf16.mxu0 0
  %1672 = vmatpush1.bf16.msra.mxu0 %v1119
  %1673 = vmatprep.subr.bf16.mxu0 0
  %1674 = vmatpush1.bf16.msra.mxu0 0
  %1675 = vmatprep.subr.bf16.mxu0 0
  %1676 = vmatpush1.bf16.msra.mxu0 0
  %1677 = vmatprep.subr.bf16.mxu0 0
  %1678 = vmatpush1.bf16.msra.mxu0 0
  %1679 = vmatprep.subr.bf16.mxu0 0
  %1680 = vmatpush1.bf16.msra.mxu0 0
  %1681 = vmatprep.subr.bf16.mxu0 0
  %1682 = vmatpush1.bf16.msra.mxu0 0
  %1683 = vmatprep.subr.bf16.mxu0 0
  %1684 = vmatpush1.bf16.msra.mxu0 0
  %1685 = vmatprep.subr.bf16.mxu0 0
  %1686 = vmatpush1.bf16.msra.mxu0 0
  %1687 = vmatprep.subr.bf16.mxu0 0
  %1688 = vmatpush1.bf16.msra.mxu0 0
  %1689 = vmatprep.subr.bf16.mxu0 0
  %1690 = vmatpush1.bf16.msra.mxu0 0
  %1691 = vmatprep.subr.bf16.mxu0 0
  %1692 = vmatpush1.bf16.msra.mxu0 0
  %1693 = vmatprep.subr.bf16.mxu0 0
  %1694 = vmatpush1.bf16.msra.mxu0 0
  %1695 = vmatprep.subr.bf16.mxu0 0
  %1696 = vmatpush1.bf16.msra.mxu0 0
  %1697 = vmatprep.subr.bf16.mxu0 0
  %1698 = vmatpush1.bf16.msra.mxu0 0
  %1699 = vmatprep.subr.bf16.mxu0 0
  %1700 = vmatpush1.bf16.msra.mxu0 0
  %1701 = vmatprep.mubr.bf16.mxu0 0
  %1702 = vmatmul.mubr.bf16.gmra.mrb[0].mxu0 %v1624
  %v1703 = vpop.f32.mrb[0].mxu0
  %v1704 = vadd.f32 %v1109, %v1703
  %v1705 = vpop.f32.mrb[0].mxu0
  %v1706 = vpop.f32.mrb[0].mxu0
  %v1707 = vadd.f32 %v1109, %v1706
  %v1708 = vpop.f32.mrb[0].mxu0
  %1709 = vdwg.mxu0
  %v1710 = vpack.c.bf16 %v1668, %v1667
  %1711 = vmatprep.subr.bf16.mxu0 0
  %1712 = vmatpush1.bf16.msra.mxu0 %v1200
  %1713 = vmatprep.subr.bf16.mxu0 0
  %1714 = vmatpush1.bf16.msra.mxu0 %v1201
  %1715 = vmatprep.subr.bf16.mxu0 0
  %1716 = vmatpush1.bf16.msra.mxu0 %v1202
  %1717 = vmatprep.subr.bf16.mxu0 0
  %1718 = vmatpush1.bf16.msra.mxu0 %v1203
  %1719 = vmatprep.subr.bf16.mxu0 0
  %1720 = vmatpush1.bf16.msra.mxu0 %v1204
  %1721 = vmatprep.subr.bf16.mxu0 0
  %1722 = vmatpush1.bf16.msra.mxu0 %v1205
  %1723 = vmatprep.subr.bf16.mxu0 0
  %1724 = vmatpush1.bf16.msra.mxu0 %v1206
  %1725 = vmatprep.subr.bf16.mxu0 0
  %1726 = vmatpush1.bf16.msra.mxu0 %v1207
  %1727 = vmatprep.subr.bf16.mxu0 0
  %1728 = vmatpush1.bf16.msra.mxu0 0
  %1729 = vmatprep.subr.bf16.mxu0 0
  %1730 = vmatpush1.bf16.msra.mxu0 0
  %1731 = vmatprep.subr.bf16.mxu0 0
  %1732 = vmatpush1.bf16.msra.mxu0 0
  %1733 = vmatprep.subr.bf16.mxu0 0
  %1734 = vmatpush1.bf16.msra.mxu0 0
  %1735 = vmatprep.subr.bf16.mxu0 0
  %1736 = vmatpush1.bf16.msra.mxu0 0
  %1737 = vmatprep.subr.bf16.mxu0 0
  %1738 = vmatpush1.bf16.msra.mxu0 0
  %1739 = vmatprep.subr.bf16.mxu0 0
  %1740 = vmatpush1.bf16.msra.mxu0 0
  %1741 = vmatprep.subr.bf16.mxu0 0
  %1742 = vmatpush1.bf16.msra.mxu0 0
  %1743 = vmatprep.mubr.bf16.mxu0 0
  %1744 = vmatmul.mubr.bf16.gmra.mrb[0].mxu0 %v1710
  %v1745 = vpop.f32.mrb[0].mxu0
  %v1746 = vadd.f32 %v1167, %v1745
  %v1747 = vpop.f32.mrb[0].mxu0
  %v1748 = vpop.f32.mrb[0].mxu0
  %v1749 = vadd.f32 %v1167, %v1748
  %v1750 = vpop.f32.mrb[0].mxu0
  %1751 = vdwg.mxu0
  %v1752 = vxor.u32 %v1746, 2147483648
  %v1753 = vxor.u32 %v1749, 2147483648
  %v1754 = vmul.f32 %v1752, 1.442695
  %v1755 = vpow.pop %v1754
  %v1756 = vmul.f32 %v1753, 1.442695
  %v1757 = vpow.pop %v1756
  %v1758 = vadd.f32 %v1755, 1.0
  %v1759 = vadd.f32 %v1757, 1.0
  %v1760 = vrcp.pop %v1758
  %v1761 = vmul.f32 1.0, %v1760
  %v1762 = vrcp.pop %v1759
  %v1763 = vmul.f32 1.0, %v1762
  %v1764 = vsel %vm647, %v1761, %v1704
  %v1765 = vsel %vm647, %v1763, %v1707
  %1766 = vst [vmem:[%s4 + $0x10] sm:$0xff] %v1764
  %1767 = vst [vmem:[%s4 + $0x18] sm:$0xff] %v1765
  // Predicated region
  $region18: #{_det_bev_call.1} parent=0 // pred_check
    _
  $region19: #{_det_bev_call.1} parent=0 // pred_check_branch
    %1769 = sbr.rel (0) target = $region21
  $region20: #{_det_bev_call.1} parent=0 // pred_region
    _
  $region21: #{_det_bev_call.1} parent=0 // pred_fallthru
    _
  // Predicated region
  $region22: #{_det_bev_call.1} parent=0 // pred_check
    _
  $region23: #{_det_bev_call.1} parent=0 // pred_check_branch
    %1771 = sbr.rel (0) target = $region25
  $region24: #{_det_bev_call.1} parent=0 // pred_region
    _
  $region25: #{_det_bev_call.1} parent=0 // pred_fallthru
    _

</llo_original>
